<compile_context>
chip_gen: v6e
topology: v6e:2x2x1
jax: 0.10.0
libtpu: 0.0.40
codegen_flags: <defaults>
</compile_context>

<pallas_src>
import functools
from math import gcd

import jax
import jax.numpy as jnp
from jax.experimental import pallas as pl
from jax.experimental.pallas import tpu as pltpu


def _dif_cost_kernel(ref_ref, tgt_ref, w1t_ref, b1_ref, w2_ref, b2_ref, mc_ref,
                     out_ref, *, num_disp, d_pad, start_disp, dilation, width):
    _, _, n = ref_ref.shape                  # block: (1, C, n); n = tile_rows * width

    ref = ref_ref[0]                         # (C, n), native dtype
    tgt = tgt_ref[0]                         # (C, n), native dtype
    w1t = w1t_ref[...]                       # (hidden, C), native dtype
    b1 = b1_ref[...]                         # (hidden, 1) f32
    w2 = w2_ref[...]                         # (1, hidden) f32
    b2 = b2_ref[...]                         # (1, 1) f32

    # C -> hidden projection, once per tile, on the MXU (default precision, f32 acc).
    hid_ref = jnp.dot(w1t, ref, preferred_element_type=jnp.float32)   # (hidden, n)
    hid_tgt = jnp.dot(w1t, tgt, preferred_element_type=jnp.float32)   # (hidden, n)
    hid_ref_b = hid_ref + b1                 # +b1 hoisted out of the disparity loop

    # Column (w) coordinate of every flattened position.  Tiles always hold complete
    # rows, so the local flattened index modulo `width` equals the global w coordinate.
    col = jax.lax.broadcasted_iota(jnp.int32, (1, n), 1) % width

    # Cost of an out-of-range column (dif == 0): w2 . relu(b1) + b2, precomputed in the
    # wrapper (parameter-only) and passed in as a (1, 1) input.
    masked_row = jnp.broadcast_to(mc_ref[...], (1, n))

    # Static unroll over (padded) disparities; each iteration stores its own lane-dense
    # (1, n) row directly, so temporaries die immediately.
    for d in range(d_pad):
        disp = start_disp + d * dilation
        if d >= num_disp or disp >= width:
            # Padding plane (d >= num_disp) or whole plane out of range -> constant.
            out_ref[0, d:d + 1, :] = masked_row
            continue
        if disp == 0:
            shifted = hid_tgt
        else:
            # Lane roll (XLU) of the projected target; wrapped columns masked below.
            shifted = pltpu.roll(hid_tgt, shift=disp, axis=1)
        act = jnp.maximum(hid_ref_b - shifted, 0.0)                       # (hidden, n)
        # hidden -> 1 reduction on the (otherwise idle) MXU.
        cost = jnp.dot(w2, act, preferred_element_type=jnp.float32) + b2  # (1, n)
        if disp > 0:
            cost = jnp.where(col >= disp, cost, masked_row)
        out_ref[0, d:d + 1, :] = cost


def _vmem_budget_bytes():
    """Generation-aware VMEM budget: ~48 MiB on v7x (64 MiB physical), 64 MiB on
    v5e/v6e (128 MiB physical); conservative 48 MiB fallback if the query fails."""
    try:
        cap = int(getattr(pltpu.get_tpu_info(), "vmem_capacity_bytes"))
    except Exception:
        cap = 64 * 1024 * 1024
    return max(32 * 1024 * 1024, min(cap * 3 // 4, 64 * 1024 * 1024))


def _pick_tile_rows(h_pad, width, rows_unit, max_tile_elems, want_tiles):
    """Largest row tile (multiple of rows_unit, dividing h_pad) whose flattened size
    fits the VMEM budget, preferring choices that leave >= want_tiles grid steps."""
    candidates = [r for r in range(rows_unit, h_pad + 1, rows_unit) if h_pad % r == 0]
    fitting = [r for r in candidates if r * width <= max_tile_elems]
    if not fitting:
        return rows_unit
    preferred = [r for r in fitting if h_pad // r >= want_tiles]
    return max(preferred) if preferred else max(fitting)


def dif_cost_processor(ref_fms, tgt_fms, params, *, max_disp=8, start_disp=0,
                       dilation=1):
    """Pallas implementation of DifCostProcessor.forward (disp_sample=None)."""
    if start_disp < 0:
        raise ValueError("start_disp must be non-negative (same contract as dif_fms).")

    batch, chans, height, width = ref_fms.shape
    num_disp = (max_disp + dilation - 1) // dilation
    d_pad = ((num_disp + 7) // 8) * 8            # sublane-dense f32 output block
    w1, b1, w2, b2 = params
    hidden = w1.shape[1]

    f32 = jnp.float32
    in_dtype = ref_fms.dtype                     # keep native dtype through the DMA
    tgt_fms = tgt_fms.astype(in_dtype)

    # Pad H so every row tile's flattened size is a multiple of 128 lanes.
    rows_unit = 128 // gcd(width, 128)
    h_pad = ((height + rows_unit - 1) // rows_unit) * rows_unit
    if h_pad != height:
        pad = ((0, 0), (0, 0), (0, h_pad - height), (0, 0))
        ref_fms = jnp.pad(ref_fms, pad)
        tgt_fms = jnp.pad(tgt_fms, pad)
    flat = h_pad * width
    ref_flat = ref_fms.reshape(batch, chans, flat)
    tgt_flat = tgt_fms.reshape(batch, chans, flat)

    w1t = jnp.asarray(w1, f32).T.astype(in_dtype)        # (hidden, C) MXU operand
    b1c = jnp.asarray(b1, f32).reshape(hidden, 1)
    w2r = jnp.asarray(w2, f32).reshape(1, hidden)
    b2c = jnp.asarray(b2, f32).reshape(1, 1)
    # Cost of an out-of-range column (dif == 0): w2 . relu(b1) + b2 (parameter-only).
    mask_cost = (jnp.sum(jnp.maximum(jnp.asarray(b1, f32), 0.0) * jnp.asarray(w2, f32))
                 + jnp.asarray(b2, f32)[0]).reshape(1, 1)

    # Tile sizing from the VMEM budget: double-buffered in/out tiles + f32 temporaries.
    budget = _vmem_budget_bytes()
    in_bytes = jnp.dtype(in_dtype).itemsize
    per_elem = (2 * 2 * chans * in_bytes         # ref/tgt tiles, double-buffered
                + 2 * d_pad * 4                  # output tile (f32), double-buffered
                + 6 * hidden * 4                 # hid_ref/tgt/+b1, shifted, act (f32)
                + 32)                            # col iota, masked_row, cost rows
    max_tile_elems = max(budget // per_elem, 256)
    want_tiles = 2 if batch < 2 else 1           # keep both v7x TensorCores busy
    tile_rows = _pick_tile_rows(h_pad, width, rows_unit, max_tile_elems, want_tiles)
    tile_flat = tile_rows * width
    # roll + (col % width) masking relies on tiles holding complete rows, lane-dense.
    assert tile_flat % width == 0
    assert tile_flat % 128 == 0
    n_tiles = flat // tile_flat
    vmem_limit = int(max(budget, per_elem * tile_flat + (2 << 20)))

    kernel = functools.partial(
        _dif_cost_kernel, num_disp=num_disp, d_pad=d_pad, start_disp=start_disp,
        dilation=dilation, width=width)

    costs = pl.pallas_call(
        kernel,
        out_shape=jax.ShapeDtypeStruct((batch, d_pad, flat), f32),
        grid_spec=pltpu.PrefetchScalarGridSpec(
            num_scalar_prefetch=0,
            grid=(batch, n_tiles),
            in_specs=[
                pl.BlockSpec((1, chans, tile_flat), lambda b, h: (b, 0, h)),
                pl.BlockSpec((1, chans, tile_flat), lambda b, h: (b, 0, h)),
                pl.BlockSpec((hidden, chans), lambda b, h: (0, 0)),   # w1^T in VMEM
                pl.BlockSpec((hidden, 1), lambda b, h: (0, 0)),       # b1
                pl.BlockSpec((1, hidden), lambda b, h: (0, 0)),       # w2 (row)
                pl.BlockSpec((1, 1), lambda b, h: (0, 0)),            # b2
                pl.BlockSpec((1, 1), lambda b, h: (0, 0)),            # masked cost
            ],
            out_specs=pl.BlockSpec((1, d_pad, tile_flat), lambda b, h: (b, 0, h)),
        ),
        compiler_params=pltpu.CompilerParams(
            dimension_semantics=("parallel", "parallel"),
            vmem_limit_bytes=vmem_limit),
    )(ref_flat, tgt_flat, w1t, b1c, w2r, b2c, mask_cost)

    # Drop D / H padding; dmb aggregators return a list of cost volumes.
    costs = costs.reshape(batch, d_pad, h_pad, width)[:, :num_disp, :height, :]
    return [costs]


def _reference(ref_fms, tgt_fms, params, *, max_disp, start_disp, dilation):
    """Pure-JAX reference of the same forward pass."""
    B, C, H, W = ref_fms.shape
    D = (max_disp + dilation - 1) // dilation
    w1, b1, w2, b2 = params

    slices = []
    for d in range(D):
        disp = start_disp + d * dilation
        if disp == 0:
            dif = ref_fms - tgt_fms
        else:
            dif = jnp.zeros_like(ref_fms)
            dif = dif.at[:, :, :, disp:].set(
                ref_fms[:, :, :, disp:] - tgt_fms[:, :, :, : W - disp])
        slices.append(dif)
    cost_vol = jnp.stack(slices, axis=2)  # (B, C, D, H, W)

    hid = jnp.einsum("bcdhw,ck->bkdhw", cost_vol, w1) + b1[None, :, None, None, None]
    hid = jnp.maximum(hid, 0.0)
    cost = jnp.einsum("bkdhw,k->bdhw", hid, w2) + b2[0]
    return cost


def _run_case(key, B, C, H, W, hidden, max_disp, start_disp, dilation):
    k_ref, k_tgt, k_w1, k_b1, k_w2, k_b2 = jax.random.split(key, 6)
    ref_fms = jax.random.normal(k_ref, (B, C, H, W), dtype=jnp.float32)
    tgt_fms = jax.random.normal(k_tgt, (B, C, H, W), dtype=jnp.float32)

    # Deterministic synthetic aggregator parameters (1x1x1 conv weights).
    w1 = jax.random.normal(k_w1, (C, hidden), dtype=jnp.float32) * 0.3
    b1 = jax.random.normal(k_b1, (hidden,), dtype=jnp.float32) * 0.1
    w2 = jax.random.normal(k_w2, (hidden,), dtype=jnp.float32) * 0.3
    b2 = jax.random.normal(k_b2, (1,), dtype=jnp.float32) * 0.1
    params = (w1, b1, w2, b2)

    costs = dif_cost_processor(ref_fms, tgt_fms, params, max_disp=max_disp,
                               start_disp=start_disp, dilation=dilation)
    out = jax.block_until_ready(costs[0])
    expected = _reference(ref_fms, tgt_fms, params, max_disp=max_disp,
                          start_disp=start_disp, dilation=dilation)

    # Both the kernel and the XLA reference use default-precision (bf16-pass) MXU
    # matmuls now that HIGHEST was dropped, and they factor the math differently
    # (project-then-shift vs shift-then-project), so allow a few e-2 of rounding slack.
    if not jnp.allclose(out, expected, atol=5e-2, rtol=5e-2):
        max_err = jnp.max(jnp.abs(out - expected))
        raise AssertionError(
            f"Pallas kernel does not match JAX reference "
            f"(shape={out.shape}, max_err={max_err})")


if __name__ == "__main__":
    key = jax.random.PRNGKey(0)
    k1, k2 = jax.random.split(key)

    # Case 1: the original small square config.
    _run_case(k1, B=2, C=4, H=16, W=16, hidden=8,
              max_disp=8, start_disp=0, dilation=1)

    # Case 2: non-square, start_disp > 0, dilation > 1, num_disp not a multiple of 8,
    # batch == 1 (exercises D padding, row tiling and the >=2-parallel-steps rule).
    _run_case(k2, B=1, C=4, H=24, W=32, hidden=8,
              max_disp=10, start_disp=2, dilation=2)

    print("KERNEL_OK")
</pallas_src>

<mosaic_0001>
module attributes {stable_mosaic.version = 11 : i64} {
  func.func @_dif_cost_kernel(%arg0: i32, %arg1: i32, %arg2: memref<1x4x256xf32, #tpu.memory_space<vmem>>, %arg3: memref<1x4x256xf32, #tpu.memory_space<vmem>>, %arg4: memref<8x4xf32, #tpu.memory_space<vmem>>, %arg5: memref<8x1xf32, #tpu.memory_space<vmem>>, %arg6: memref<1x8xf32, #tpu.memory_space<vmem>>, %arg7: memref<1x1xf32, #tpu.memory_space<vmem>>, %arg8: memref<1x1xf32, #tpu.memory_space<vmem>>, %arg9: memref<1x8x256xf32, #tpu.memory_space<vmem>>) attributes {dimension_semantics = [#tpu.dimension_semantics<parallel>, #tpu.dimension_semantics<parallel>], iteration_bounds = array<i64: 2, 1>, scalar_prefetch = 0 : i64, scratch_operands = 0 : i64, tpu.core_type = #tpu.core_type<tc>, window_params = [{transform_indices = @transform_0, window_bounds = array<i64: 1, 4, 256>}, {transform_indices = @transform_1, window_bounds = array<i64: 1, 4, 256>}, {pipeline_mode = #tpu.pipeline_mode<synchronous>, transform_indices = @transform_2, window_bounds = array<i64: 8, 4>}, {pipeline_mode = #tpu.pipeline_mode<synchronous>, transform_indices = @transform_3, window_bounds = array<i64: 8, 1>}, {pipeline_mode = #tpu.pipeline_mode<synchronous>, transform_indices = @transform_4, window_bounds = array<i64: 1, 8>}, {pipeline_mode = #tpu.pipeline_mode<synchronous>, transform_indices = @transform_5, window_bounds = array<i64: 1, 1>}, {pipeline_mode = #tpu.pipeline_mode<synchronous>, transform_indices = @transform_6, window_bounds = array<i64: 1, 1>}, {transform_indices = @transform_7, window_bounds = array<i64: 1, 8, 256>}]} {
    %c0 = arith.constant 0 : index
    %c0_0 = arith.constant 0 : index
    %c0_1 = arith.constant 0 : index
    %0 = vector.load %arg2[%c0, %c0_0, %c0_1] : memref<1x4x256xf32, #tpu.memory_space<vmem>>, vector<1x4x256xf32>
    %1 = vector.shape_cast %0 : vector<1x4x256xf32> to vector<4x256xf32>
    %c0_2 = arith.constant 0 : index
    %c0_3 = arith.constant 0 : index
    %c0_4 = arith.constant 0 : index
    %2 = vector.load %arg3[%c0_2, %c0_3, %c0_4] : memref<1x4x256xf32, #tpu.memory_space<vmem>>, vector<1x4x256xf32>
    %3 = vector.shape_cast %2 : vector<1x4x256xf32> to vector<4x256xf32>
    %c0_5 = arith.constant 0 : index
    %c0_6 = arith.constant 0 : index
    %4 = vector.load %arg4[%c0_5, %c0_6] : memref<8x4xf32, #tpu.memory_space<vmem>>, vector<8x4xf32>
    %c0_7 = arith.constant 0 : index
    %c0_8 = arith.constant 0 : index
    %5 = vector.load %arg5[%c0_7, %c0_8] : memref<8x1xf32, #tpu.memory_space<vmem>>, vector<8x1xf32>
    %c0_9 = arith.constant 0 : index
    %c0_10 = arith.constant 0 : index
    %6 = vector.load %arg6[%c0_9, %c0_10] : memref<1x8xf32, #tpu.memory_space<vmem>>, vector<1x8xf32>
    %c0_11 = arith.constant 0 : index
    %c0_12 = arith.constant 0 : index
    %7 = vector.load %arg7[%c0_11, %c0_12] : memref<1x1xf32, #tpu.memory_space<vmem>>, vector<1x1xf32>
    %cst = arith.constant dense<0.000000e+00> : vector<8x256xf32>
    %8 = tpu.matmul %4, %1, %cst {dimension_numbers = #tpu.dot_dimension_numbers<[1], [0], [0], [1], [0, 0, 1, 1], [], []>} : vector<8x4xf32>, vector<4x256xf32>, vector<8x256xf32> -> vector<8x256xf32>
    %cst_13 = arith.constant dense<0.000000e+00> : vector<8x256xf32>
    %9 = tpu.matmul %4, %3, %cst_13 {dimension_numbers = #tpu.dot_dimension_numbers<[1], [0], [0], [1], [0, 0, 1, 1], [], []>} : vector<8x4xf32>, vector<4x256xf32>, vector<8x256xf32> -> vector<8x256xf32>
    %10 = vector.broadcast %5 : vector<8x1xf32> to vector<8x256xf32>
    %11 = arith.addf %8, %10 : vector<8x256xf32>
    %12 = tpu.iota {dimensions = array<i32: 1>} : vector<1x256xi32>
    %c16_i32 = arith.constant 16 : i32
    %c0_i32 = arith.constant 0 : i32
    %13 = arith.cmpi eq, %c16_i32, %c0_i32 : i32
    %c1_i32 = arith.constant 1 : i32
    %14 = arith.select %13, %c1_i32, %c16_i32 : i32
    %15 = vector.broadcast %14 : i32 to vector<1x256xi32>
    %16 = arith.remsi %12, %15 : vector<1x256xi32>
    %c0_i32_14 = arith.constant 0 : i32
    %17 = vector.broadcast %c0_i32_14 : i32 to vector<1x256xi32>
    %18 = arith.cmpi ne, %16, %17 : vector<1x256xi32>
    %c0_i32_15 = arith.constant 0 : i32
    %19 = vector.broadcast %c0_i32_15 : i32 to vector<1x256xi32>
    %20 = arith.cmpi slt, %16, %19 : vector<1x256xi32>
    %c0_i32_16 = arith.constant 0 : i32
    %21 = arith.cmpi slt, %14, %c0_i32_16 : i32
    %22 = vector.broadcast %21 : i1 to vector<1x256xi1>
    %23 = vector.broadcast %22 : vector<1x256xi1> to vector<1x256xi1>
    %24 = arith.xori %20, %23 : vector<1x256xi1>
    %25 = arith.andi %24, %18 : vector<1x256xi1>
    %26 = vector.broadcast %14 : i32 to vector<1x256xi32>
    %27 = arith.addi %16, %26 : vector<1x256xi32>
    %28 = arith.select %25, %27, %16 : vector<1x256xi1>, vector<1x256xi32>
    %c0_17 = arith.constant 0 : index
    %c0_18 = arith.constant 0 : index
    %29 = vector.load %arg8[%c0_17, %c0_18] : memref<1x1xf32, #tpu.memory_space<vmem>>, vector<1x1xf32>
    %30 = vector.shape_cast %29 : vector<1x1xf32> to vector<1x1xf32>
    %31 = vector.broadcast %30 : vector<1x1xf32> to vector<1x256xf32>
    %32 = arith.subf %11, %9 : vector<8x256xf32>
    %cst_19 = arith.constant 0.000000e+00 : f32
    %33 = vector.broadcast %cst_19 : f32 to vector<8x256xf32>
    %34 = arith.maximumf %32, %33 : vector<8x256xf32>
    %cst_20 = arith.constant dense<0.000000e+00> : vector<1x256xf32>
    %35 = tpu.matmul %6, %34, %cst_20 {dimension_numbers = #tpu.dot_dimension_numbers<[1], [0], [0], [1], [0, 0, 1, 1], [], []>} : vector<1x8xf32>, vector<8x256xf32>, vector<1x256xf32> -> vector<1x256xf32>
    %36 = vector.broadcast %7 : vector<1x1xf32> to vector<1x256xf32>
    %37 = arith.addf %35, %36 : vector<1x256xf32>
    %c0_21 = arith.constant 0 : index
    %c0_22 = arith.constant 0 : index
    %c0_23 = arith.constant 0 : index
    %38 = vector.load %arg9[%c0_21, %c0_22, %c0_23] : memref<1x8x256xf32, #tpu.memory_space<vmem>>, vector<1x1x256xf32>
    %39 = vector.shape_cast %38 : vector<1x1x256xf32> to vector<1x256xf32>
    %40 = vector.shape_cast %37 : vector<1x256xf32> to vector<1x1x256xf32>
    tpu.vector_store %arg9[%c0_21, %c0_22, %c0_23], %40 {strides = array<i32>} : memref<1x8x256xf32, #tpu.memory_space<vmem>>, vector<1x1x256xf32>,
    %c1_i32_24 = arith.constant 1 : i32
    %41 = tpu.dynamic_rotate %9 by %c1_i32_24 dim 1 : vector<8x256xf32>, i32 -> vector<8x256xf32>
    %42 = arith.subf %11, %41 : vector<8x256xf32>
    %cst_25 = arith.constant 0.000000e+00 : f32
    %43 = vector.broadcast %cst_25 : f32 to vector<8x256xf32>
    %44 = arith.maximumf %42, %43 : vector<8x256xf32>
    %cst_26 = arith.constant dense<0.000000e+00> : vector<1x256xf32>
    %45 = tpu.matmul %6, %44, %cst_26 {dimension_numbers = #tpu.dot_dimension_numbers<[1], [0], [0], [1], [0, 0, 1, 1], [], []>} : vector<1x8xf32>, vector<8x256xf32>, vector<1x256xf32> -> vector<1x256xf32>
    %46 = vector.broadcast %7 : vector<1x1xf32> to vector<1x256xf32>
    %47 = arith.addf %45, %46 : vector<1x256xf32>
    %c1_i32_27 = arith.constant 1 : i32
    %48 = vector.broadcast %c1_i32_27 : i32 to vector<1x256xi32>
    %49 = arith.cmpi sge, %28, %48 : vector<1x256xi32>
    %50 = arith.select %49, %47, %31 : vector<1x256xi1>, vector<1x256xf32>
    %c0_28 = arith.constant 0 : index
    %c1 = arith.constant 1 : index
    %c0_29 = arith.constant 0 : index
    %51 = vector.load %arg9[%c0_28, %c1, %c0_29] : memref<1x8x256xf32, #tpu.memory_space<vmem>>, vector<1x1x256xf32>
    %52 = vector.shape_cast %51 : vector<1x1x256xf32> to vector<1x256xf32>
    %53 = vector.shape_cast %50 : vector<1x256xf32> to vector<1x1x256xf32>
    tpu.vector_store %arg9[%c0_28, %c1, %c0_29], %53 {strides = array<i32>} : memref<1x8x256xf32, #tpu.memory_space<vmem>>, vector<1x1x256xf32>,
    %c2_i32 = arith.constant 2 : i32
    %54 = tpu.dynamic_rotate %9 by %c2_i32 dim 1 : vector<8x256xf32>, i32 -> vector<8x256xf32>
    %55 = arith.subf %11, %54 : vector<8x256xf32>
    %cst_30 = arith.constant 0.000000e+00 : f32
    %56 = vector.broadcast %cst_30 : f32 to vector<8x256xf32>
    %57 = arith.maximumf %55, %56 : vector<8x256xf32>
    %cst_31 = arith.constant dense<0.000000e+00> : vector<1x256xf32>
    %58 = tpu.matmul %6, %57, %cst_31 {dimension_numbers = #tpu.dot_dimension_numbers<[1], [0], [0], [1], [0, 0, 1, 1], [], []>} : vector<1x8xf32>, vector<8x256xf32>, vector<1x256xf32> -> vector<1x256xf32>
    %59 = vector.broadcast %7 : vector<1x1xf32> to vector<1x256xf32>
    %60 = arith.addf %58, %59 : vector<1x256xf32>
    %c2_i32_32 = arith.constant 2 : i32
    %61 = vector.broadcast %c2_i32_32 : i32 to vector<1x256xi32>
    %62 = arith.cmpi sge, %28, %61 : vector<1x256xi32>
    %63 = arith.select %62, %60, %31 : vector<1x256xi1>, vector<1x256xf32>
    %c0_33 = arith.constant 0 : index
    %c2 = arith.constant 2 : index
    %c0_34 = arith.constant 0 : index
    %64 = vector.load %arg9[%c0_33, %c2, %c0_34] : memref<1x8x256xf32, #tpu.memory_space<vmem>>, vector<1x1x256xf32>
    %65 = vector.shape_cast %64 : vector<1x1x256xf32> to vector<1x256xf32>
    %66 = vector.shape_cast %63 : vector<1x256xf32> to vector<1x1x256xf32>
    tpu.vector_store %arg9[%c0_33, %c2, %c0_34], %66 {strides = array<i32>} : memref<1x8x256xf32, #tpu.memory_space<vmem>>, vector<1x1x256xf32>,
    %c3_i32 = arith.constant 3 : i32
    %67 = tpu.dynamic_rotate %9 by %c3_i32 dim 1 : vector<8x256xf32>, i32 -> vector<8x256xf32>
    %68 = arith.subf %11, %67 : vector<8x256xf32>
    %cst_35 = arith.constant 0.000000e+00 : f32
    %69 = vector.broadcast %cst_35 : f32 to vector<8x256xf32>
    %70 = arith.maximumf %68, %69 : vector<8x256xf32>
    %cst_36 = arith.constant dense<0.000000e+00> : vector<1x256xf32>
    %71 = tpu.matmul %6, %70, %cst_36 {dimension_numbers = #tpu.dot_dimension_numbers<[1], [0], [0], [1], [0, 0, 1, 1], [], []>} : vector<1x8xf32>, vector<8x256xf32>, vector<1x256xf32> -> vector<1x256xf32>
    %72 = vector.broadcast %7 : vector<1x1xf32> to vector<1x256xf32>
    %73 = arith.addf %71, %72 : vector<1x256xf32>
    %c3_i32_37 = arith.constant 3 : i32
    %74 = vector.broadcast %c3_i32_37 : i32 to vector<1x256xi32>
    %75 = arith.cmpi sge, %28, %74 : vector<1x256xi32>
    %76 = arith.select %75, %73, %31 : vector<1x256xi1>, vector<1x256xf32>
    %c0_38 = arith.constant 0 : index
    %c3 = arith.constant 3 : index
    %c0_39 = arith.constant 0 : index
    %77 = vector.load %arg9[%c0_38, %c3, %c0_39] : memref<1x8x256xf32, #tpu.memory_space<vmem>>, vector<1x1x256xf32>
    %78 = vector.shape_cast %77 : vector<1x1x256xf32> to vector<1x256xf32>
    %79 = vector.shape_cast %76 : vector<1x256xf32> to vector<1x1x256xf32>
    tpu.vector_store %arg9[%c0_38, %c3, %c0_39], %79 {strides = array<i32>} : memref<1x8x256xf32, #tpu.memory_space<vmem>>, vector<1x1x256xf32>,
    %c4_i32 = arith.constant 4 : i32
    %80 = tpu.dynamic_rotate %9 by %c4_i32 dim 1 : vector<8x256xf32>, i32 -> vector<8x256xf32>
    %81 = arith.subf %11, %80 : vector<8x256xf32>
    %cst_40 = arith.constant 0.000000e+00 : f32
    %82 = vector.broadcast %cst_40 : f32 to vector<8x256xf32>
    %83 = arith.maximumf %81, %82 : vector<8x256xf32>
    %cst_41 = arith.constant dense<0.000000e+00> : vector<1x256xf32>
    %84 = tpu.matmul %6, %83, %cst_41 {dimension_numbers = #tpu.dot_dimension_numbers<[1], [0], [0], [1], [0, 0, 1, 1], [], []>} : vector<1x8xf32>, vector<8x256xf32>, vector<1x256xf32> -> vector<1x256xf32>
    %85 = vector.broadcast %7 : vector<1x1xf32> to vector<1x256xf32>
    %86 = arith.addf %84, %85 : vector<1x256xf32>
    %c4_i32_42 = arith.constant 4 : i32
    %87 = vector.broadcast %c4_i32_42 : i32 to vector<1x256xi32>
    %88 = arith.cmpi sge, %28, %87 : vector<1x256xi32>
    %89 = arith.select %88, %86, %31 : vector<1x256xi1>, vector<1x256xf32>
    %c0_43 = arith.constant 0 : index
    %c4 = arith.constant 4 : index
    %c0_44 = arith.constant 0 : index
    %90 = vector.load %arg9[%c0_43, %c4, %c0_44] : memref<1x8x256xf32, #tpu.memory_space<vmem>>, vector<1x1x256xf32>
    %91 = vector.shape_cast %90 : vector<1x1x256xf32> to vector<1x256xf32>
    %92 = vector.shape_cast %89 : vector<1x256xf32> to vector<1x1x256xf32>
    tpu.vector_store %arg9[%c0_43, %c4, %c0_44], %92 {strides = array<i32>} : memref<1x8x256xf32, #tpu.memory_space<vmem>>, vector<1x1x256xf32>,
    %c5_i32 = arith.constant 5 : i32
    %93 = tpu.dynamic_rotate %9 by %c5_i32 dim 1 : vector<8x256xf32>, i32 -> vector<8x256xf32>
    %94 = arith.subf %11, %93 : vector<8x256xf32>
    %cst_45 = arith.constant 0.000000e+00 : f32
    %95 = vector.broadcast %cst_45 : f32 to vector<8x256xf32>
    %96 = arith.maximumf %94, %95 : vector<8x256xf32>
    %cst_46 = arith.constant dense<0.000000e+00> : vector<1x256xf32>
    %97 = tpu.matmul %6, %96, %cst_46 {dimension_numbers = #tpu.dot_dimension_numbers<[1], [0], [0], [1], [0, 0, 1, 1], [], []>} : vector<1x8xf32>, vector<8x256xf32>, vector<1x256xf32> -> vector<1x256xf32>
    %98 = vector.broadcast %7 : vector<1x1xf32> to vector<1x256xf32>
    %99 = arith.addf %97, %98 : vector<1x256xf32>
    %c5_i32_47 = arith.constant 5 : i32
    %100 = vector.broadcast %c5_i32_47 : i32 to vector<1x256xi32>
    %101 = arith.cmpi sge, %28, %100 : vector<1x256xi32>
    %102 = arith.select %101, %99, %31 : vector<1x256xi1>, vector<1x256xf32>
    %c0_48 = arith.constant 0 : index
    %c5 = arith.constant 5 : index
    %c0_49 = arith.constant 0 : index
    %103 = vector.load %arg9[%c0_48, %c5, %c0_49] : memref<1x8x256xf32, #tpu.memory_space<vmem>>, vector<1x1x256xf32>
    %104 = vector.shape_cast %103 : vector<1x1x256xf32> to vector<1x256xf32>
    %105 = vector.shape_cast %102 : vector<1x256xf32> to vector<1x1x256xf32>
    tpu.vector_store %arg9[%c0_48, %c5, %c0_49], %105 {strides = array<i32>} : memref<1x8x256xf32, #tpu.memory_space<vmem>>, vector<1x1x256xf32>,
    %c6_i32 = arith.constant 6 : i32
    %106 = tpu.dynamic_rotate %9 by %c6_i32 dim 1 : vector<8x256xf32>, i32 -> vector<8x256xf32>
    %107 = arith.subf %11, %106 : vector<8x256xf32>
    %cst_50 = arith.constant 0.000000e+00 : f32
    %108 = vector.broadcast %cst_50 : f32 to vector<8x256xf32>
    %109 = arith.maximumf %107, %108 : vector<8x256xf32>
    %cst_51 = arith.constant dense<0.000000e+00> : vector<1x256xf32>
    %110 = tpu.matmul %6, %109, %cst_51 {dimension_numbers = #tpu.dot_dimension_numbers<[1], [0], [0], [1], [0, 0, 1, 1], [], []>} : vector<1x8xf32>, vector<8x256xf32>, vector<1x256xf32> -> vector<1x256xf32>
    %111 = vector.broadcast %7 : vector<1x1xf32> to vector<1x256xf32>
    %112 = arith.addf %110, %111 : vector<1x256xf32>
    %c6_i32_52 = arith.constant 6 : i32
    %113 = vector.broadcast %c6_i32_52 : i32 to vector<1x256xi32>
    %114 = arith.cmpi sge, %28, %113 : vector<1x256xi32>
    %115 = arith.select %114, %112, %31 : vector<1x256xi1>, vector<1x256xf32>
    %c0_53 = arith.constant 0 : index
    %c6 = arith.constant 6 : index
    %c0_54 = arith.constant 0 : index
    %116 = vector.load %arg9[%c0_53, %c6, %c0_54] : memref<1x8x256xf32, #tpu.memory_space<vmem>>, vector<1x1x256xf32>
    %117 = vector.shape_cast %116 : vector<1x1x256xf32> to vector<1x256xf32>
    %118 = vector.shape_cast %115 : vector<1x256xf32> to vector<1x1x256xf32>
    tpu.vector_store %arg9[%c0_53, %c6, %c0_54], %118 {strides = array<i32>} : memref<1x8x256xf32, #tpu.memory_space<vmem>>, vector<1x1x256xf32>,
    %c7_i32 = arith.constant 7 : i32
    %119 = tpu.dynamic_rotate %9 by %c7_i32 dim 1 : vector<8x256xf32>, i32 -> vector<8x256xf32>
    %120 = arith.subf %11, %119 : vector<8x256xf32>
    %cst_55 = arith.constant 0.000000e+00 : f32
    %121 = vector.broadcast %cst_55 : f32 to vector<8x256xf32>
    %122 = arith.maximumf %120, %121 : vector<8x256xf32>
    %cst_56 = arith.constant dense<0.000000e+00> : vector<1x256xf32>
    %123 = tpu.matmul %6, %122, %cst_56 {dimension_numbers = #tpu.dot_dimension_numbers<[1], [0], [0], [1], [0, 0, 1, 1], [], []>} : vector<1x8xf32>, vector<8x256xf32>, vector<1x256xf32> -> vector<1x256xf32>
    %124 = vector.broadcast %7 : vector<1x1xf32> to vector<1x256xf32>
    %125 = arith.addf %123, %124 : vector<1x256xf32>
    %c7_i32_57 = arith.constant 7 : i32
    %126 = vector.broadcast %c7_i32_57 : i32 to vector<1x256xi32>
    %127 = arith.cmpi sge, %28, %126 : vector<1x256xi32>
    %128 = arith.select %127, %125, %31 : vector<1x256xi1>, vector<1x256xf32>
    %c0_58 = arith.constant 0 : index
    %c7 = arith.constant 7 : index
    %c0_59 = arith.constant 0 : index
    %129 = vector.load %arg9[%c0_58, %c7, %c0_59] : memref<1x8x256xf32, #tpu.memory_space<vmem>>, vector<1x1x256xf32>
    %130 = vector.shape_cast %129 : vector<1x1x256xf32> to vector<1x256xf32>
    %131 = vector.shape_cast %128 : vector<1x256xf32> to vector<1x1x256xf32>
    tpu.vector_store %arg9[%c0_58, %c7, %c0_59], %131 {strides = array<i32>} : memref<1x8x256xf32, #tpu.memory_space<vmem>>, vector<1x1x256xf32>,
    return
  }
  func.func @transform_0(%arg0: i32, %arg1: i32) -> (i32, i32, i32) {
    %c0_i32 = arith.constant 0 : i32
    %c0_i32_0 = arith.constant 0 : i32
    return %arg0, %c0_i32, %arg1 : i32, i32, i32
  }
  func.func @transform_1(%arg0: i32, %arg1: i32) -> (i32, i32, i32) {
    %c0_i32 = arith.constant 0 : i32
    %c0_i32_0 = arith.constant 0 : i32
    return %arg0, %c0_i32, %arg1 : i32, i32, i32
  }
  func.func @transform_2(%arg0: i32, %arg1: i32) -> (i32, i32) {
    %c0_i32 = arith.constant 0 : i32
    %c0_i32_0 = arith.constant 0 : i32
    %c0_i32_1 = arith.constant 0 : i32
    return %c0_i32, %c0_i32_0 : i32, i32
  }
  func.func @transform_3(%arg0: i32, %arg1: i32) -> (i32, i32) {
    %c0_i32 = arith.constant 0 : i32
    %c0_i32_0 = arith.constant 0 : i32
    %c0_i32_1 = arith.constant 0 : i32
    return %c0_i32, %c0_i32_0 : i32, i32
  }
  func.func @transform_4(%arg0: i32, %arg1: i32) -> (i32, i32) {
    %c0_i32 = arith.constant 0 : i32
    %c0_i32_0 = arith.constant 0 : i32
    %c0_i32_1 = arith.constant 0 : i32
    return %c0_i32, %c0_i32_0 : i32, i32
  }
  func.func @transform_5(%arg0: i32, %arg1: i32) -> (i32, i32) {
    %c0_i32 = arith.constant 0 : i32
    %c0_i32_0 = arith.constant 0 : i32
    %c0_i32_1 = arith.constant 0 : i32
    return %c0_i32, %c0_i32_0 : i32, i32
  }
  func.func @transform_6(%arg0: i32, %arg1: i32) -> (i32, i32) {
    %c0_i32 = arith.constant 0 : i32
    %c0_i32_0 = arith.constant 0 : i32
    %c0_i32_1 = arith.constant 0 : i32
    return %c0_i32, %c0_i32_0 : i32, i32
  }
  func.func @transform_7(%arg0: i32, %arg1: i32) -> (i32, i32, i32) {
    %c0_i32 = arith.constant 0 : i32
    %c0_i32_0 = arith.constant 0 : i32
    return %arg0, %c0_i32, %arg1 : i32, i32, i32
  }
}

</mosaic_0001>

<llo_original>
// kernel: tpu_custom_call.1
$region0: #{tpu_custom_call.1}
  #allocation0 [shape = 'u32[]', space=smem, size = 0x4, offset = 0x4, fixed_abs, tag = 'smem constant byte address 0x4 - core index']
  #allocation1 [shape = 'u32[144,128]{1,0:T(1,128)}', space=vmem, size = 0x12000, scoped, tag = 'internal scratch']
  #allocation2 [shape = 'f32[1,1]{1,0:T(1,128)S(1)}', space=vmem, size = 0x200, scoped, tag = 'scoped memory for tpu_custom_call.1']
  #allocation3 [shape = 'f32[1,1]{1,0:T(1,128)S(1)}', space=vmem, size = 0x200, scoped, tag = 'scoped memory for tpu_custom_call.1']
  %s0 = inlined_call_operand.vmem [shape: f32[2,4,256], index: 0, kind: input, shape index: {}]
  %s1 = inlined_call_operand.hbm [shape: f32[2,4,256], index: 1, kind: input, shape index: {}]
  %s2 = inlined_call_operand.vmem [shape: f32[8,4], index: 2, kind: input, shape index: {}]
  %s3 = inlined_call_operand.vmem [shape: f32[8,1], index: 3, kind: input, shape index: {}]
  %s4 = inlined_call_operand.vmem [shape: f32[1,8], index: 4, kind: input, shape index: {}]
  %s5 = inlined_call_operand.<no memory space> [shape: f32[1,1], index: 5, kind: input, shape index: {}]
  %s6 = inlined_call_operand.<no memory space> [shape: f32[1,1], index: 6, kind: input, shape index: {}]
  %s7 = inlined_call_operand.hbm [shape: f32[2,8,256], index: 7, kind: output, shape index: {}]
  %s8 = sld [smem:[#allocation0]]
  $region65: #{tpu_custom_call.1} parent=0
    _
  %s10 = ssub.s32 1, %s8
  %s11 = scalar_select 0, %s10, %s8
  %v12 = vstv %s5
  %13 = vst [vmem:[#allocation2] sm:$0x1] %v12
  %v14 = vstv %s6
  %15 = vst [vmem:[#allocation3] sm:$0x1] %v14
  $region1: #{tpu_custom_call.1} parent=0
    #allocation4 [shape = 'u8[8192]{0}', space=vmem, size = 0x2000, scoped, tag = 'input window, operand 1']
    #allocation5 [shape = 's32[2]{0}', space=sflag, size = 0x8, scoped, tag = 'scoped memory for tpu_custom_call.1']
    #allocation6 [shape = 's32[2]{0}', space=sflag, size = 0x8, scoped, tag = 'scoped memory for tpu_custom_call.1']
    #allocation7 [shape = 'u8[16384]{0}', space=vmem, size = 0x4000, scoped, tag = 'output window, operand 0']
    %16 = vsyncpa [#allocation5], 0
    %s17 = scalar_lea.sflag [#allocation5], 1
    %18 = vsyncpa %s17, 0
    %19 = vsyncpa [#allocation6], 0
    %s20 = scalar_lea.sflag [#allocation6], 1
    %21 = vsyncpa %s20, 0
    loop: start=0, step=1, limit=4
    $region2: #{tpu_custom_call.1} parent=1 // loop_pre_header
      _
    $region3: #{tpu_custom_call.1} parent=1 // loop_header
      %s23 = sphi 0, %s27
      %p24 = scmp.ge.s32.totalorder %s23, 4
      %s30 = sphi 0, %s42
      %s31 = sphi 0, %s38
      %s32 = sphi 0, %s30
      %s33 = sphi 0, %s31
      %s34 = sphi 0, %s32
      %s35 = sphi 0, %s33
      %s47 = sphi 0, %s49
      %s50 = sphi 0, %s47
      %s51 = sphi 0, %s50
      %s67 = sphi 0, %s51
      %s75 = sphi 0, %s77
      %s78 = sphi 0, %s75
      %s79 = sphi 0, %s78
      %s95 = sphi 0, %s79
      %s99 = sphi 0, %s99
      %s101 = sphi 0, %s99
      %s102 = sphi 0, %s101
      %s116 = sphi 0, %s102
      %s120 = sphi 0, %s120
      %s122 = sphi 0, %s120
      %s123 = sphi 0, %s122
      %s137 = sphi 0, %s123
      %s141 = sphi 0, %s141
      %s143 = sphi 0, %s141
      %s144 = sphi 0, %s143
      %s158 = sphi 0, %s144
      %s162 = sphi 0, %s162
      %s164 = sphi 0, %s162
      %s165 = sphi 0, %s164
      %s179 = sphi 0, %s165
      %s183 = sphi 0, %s183
      %s185 = sphi 0, %s183
      %s186 = sphi 0, %s185
      %s200 = sphi 0, %s186
      %s208 = sphi 0, %s210
      %s211 = sphi 0, %s208
      %s212 = sphi 0, %s211
      %s228 = sphi 0, %s212
    $region4: #{tpu_custom_call.1} parent=1 // loop_header_branch
      %26 = sbr.rel (%p24) target = $region8
    $region5: #{tpu_custom_call.1} parent=1 // loop_body
      %s28 = ssub.s32 %s23, 1
      %s29 = ssub.s32 %s23, 2
      %s36 = sadd.s32 1, %s31
      %p37 = scmp.ge.s32.totalorder %s36, 1
      %s38 = scalar_select %p37, 0, %s36
      %s39 = sadd.s32 1, %s30
      %s40 = scalar_select %p37, %s39, %s30
      %p41 = scmp.ge.s32.totalorder %s40, 2
      %s42 = scalar_select %p41, 0, %s40
      %s43 = ssub.s32 %s30, %s42
      %s44 = ssub.s32 %s31, %s38
      %s45 = sor.u32 %s43, %s44
      %p46 = scmp.eq.s32.totalorder %s45, 0
      %s48 = sadd.s32 %s47, 1
      %s49 = scalar_select %p46, %s47, %s48
      %p52 = pneg %p46
      %p53 = scmp.eq.s32.totalorder %s23, 1
      %p54 = por %p52, %p53
      %p55 = scmp.ne.s32.totalorder %s47, %s50
      %p56 = scmp.eq.s32.totalorder %s23, 0
      %p57 = por %p55, %p56
      %p58 = scmp.ne.s32.totalorder %s47, %s50
      %p59 = scmp.eq.s32.totalorder %s28, 1
      %p60 = por %p58, %p59
      %p61 = scmp.ne.s32.totalorder %s50, %s51
      %p62 = scmp.eq.s32.totalorder %s28, 0
      %p63 = por %p61, %p62
      %p64 = scmp.ne.s32.totalorder %s50, %s51
      %p65 = scmp.eq.s32.totalorder %s29, 1
      %p66 = por %p64, %p65
      %p68 = scmp.ne.s32.totalorder %s51, %s67
      %p69 = scmp.eq.s32.totalorder %s29, 0
      %p70 = por %p68, %p69
      %s71 = ssub.s32 %s30, %s42
      %s72 = ssub.s32 %s31, %s38
      %s73 = sor.u32 %s71, %s72
      %p74 = scmp.eq.s32.totalorder %s73, 0
      %s76 = sadd.s32 %s75, 1
      %s77 = scalar_select %p74, %s75, %s76
      %p80 = pneg %p74
      %p81 = scmp.eq.s32.totalorder %s23, 1
      %p82 = por %p80, %p81
      %p83 = scmp.ne.s32.totalorder %s75, %s78
      %p84 = scmp.eq.s32.totalorder %s23, 0
      %p85 = por %p83, %p84
      %p86 = scmp.ne.s32.totalorder %s75, %s78
      %p87 = scmp.eq.s32.totalorder %s28, 1
      %p88 = por %p86, %p87
      %p89 = scmp.ne.s32.totalorder %s78, %s79
      %p90 = scmp.eq.s32.totalorder %s28, 0
      %p91 = por %p89, %p90
      %p92 = scmp.ne.s32.totalorder %s78, %s79
      %p93 = scmp.eq.s32.totalorder %s29, 1
      %p94 = por %p92, %p93
      %p96 = scmp.ne.s32.totalorder %s79, %s95
      %p97 = scmp.eq.s32.totalorder %s29, 0
      %p98 = por %p96, %p97
      %s100 = sadd.s32 %s99, 1
      %p103 = scmp.eq.s32.totalorder %s23, 1
      %p104 = scmp.ne.s32.totalorder %s99, %s101
      %p105 = scmp.eq.s32.totalorder %s23, 0
      %p106 = por %p104, %p105
      %p107 = scmp.ne.s32.totalorder %s99, %s101
      %p108 = scmp.eq.s32.totalorder %s28, 1
      %p109 = por %p107, %p108
      %p110 = scmp.ne.s32.totalorder %s101, %s102
      %p111 = scmp.eq.s32.totalorder %s28, 0
      %p112 = por %p110, %p111
      %p113 = scmp.ne.s32.totalorder %s101, %s102
      %p114 = scmp.eq.s32.totalorder %s29, 1
      %p115 = por %p113, %p114
      %p117 = scmp.ne.s32.totalorder %s102, %s116
      %p118 = scmp.eq.s32.totalorder %s29, 0
      %p119 = por %p117, %p118
      %s121 = sadd.s32 %s120, 1
      %p124 = scmp.eq.s32.totalorder %s23, 1
      %p125 = scmp.ne.s32.totalorder %s120, %s122
      %p126 = scmp.eq.s32.totalorder %s23, 0
      %p127 = por %p125, %p126
      %p128 = scmp.ne.s32.totalorder %s120, %s122
      %p129 = scmp.eq.s32.totalorder %s28, 1
      %p130 = por %p128, %p129
      %p131 = scmp.ne.s32.totalorder %s122, %s123
      %p132 = scmp.eq.s32.totalorder %s28, 0
      %p133 = por %p131, %p132
      %p134 = scmp.ne.s32.totalorder %s122, %s123
      %p135 = scmp.eq.s32.totalorder %s29, 1
      %p136 = por %p134, %p135
      %p138 = scmp.ne.s32.totalorder %s123, %s137
      %p139 = scmp.eq.s32.totalorder %s29, 0
      %p140 = por %p138, %p139
      %s142 = sadd.s32 %s141, 1
      %p145 = scmp.eq.s32.totalorder %s23, 1
      %p146 = scmp.ne.s32.totalorder %s141, %s143
      %p147 = scmp.eq.s32.totalorder %s23, 0
      %p148 = por %p146, %p147
      %p149 = scmp.ne.s32.totalorder %s141, %s143
      %p150 = scmp.eq.s32.totalorder %s28, 1
      %p151 = por %p149, %p150
      %p152 = scmp.ne.s32.totalorder %s143, %s144
      %p153 = scmp.eq.s32.totalorder %s28, 0
      %p154 = por %p152, %p153
      %p155 = scmp.ne.s32.totalorder %s143, %s144
      %p156 = scmp.eq.s32.totalorder %s29, 1
      %p157 = por %p155, %p156
      %p159 = scmp.ne.s32.totalorder %s144, %s158
      %p160 = scmp.eq.s32.totalorder %s29, 0
      %p161 = por %p159, %p160
      %s163 = sadd.s32 %s162, 1
      %p166 = scmp.eq.s32.totalorder %s23, 1
      %p167 = scmp.ne.s32.totalorder %s162, %s164
      %p168 = scmp.eq.s32.totalorder %s23, 0
      %p169 = por %p167, %p168
      %p170 = scmp.ne.s32.totalorder %s162, %s164
      %p171 = scmp.eq.s32.totalorder %s28, 1
      %p172 = por %p170, %p171
      %p173 = scmp.ne.s32.totalorder %s164, %s165
      %p174 = scmp.eq.s32.totalorder %s28, 0
      %p175 = por %p173, %p174
      %p176 = scmp.ne.s32.totalorder %s164, %s165
      %p177 = scmp.eq.s32.totalorder %s29, 1
      %p178 = por %p176, %p177
      %p180 = scmp.ne.s32.totalorder %s165, %s179
      %p181 = scmp.eq.s32.totalorder %s29, 0
      %p182 = por %p180, %p181
      %s184 = sadd.s32 %s183, 1
      %p187 = scmp.eq.s32.totalorder %s23, 1
      %p188 = scmp.ne.s32.totalorder %s183, %s185
      %p189 = scmp.eq.s32.totalorder %s23, 0
      %p190 = por %p188, %p189
      %p191 = scmp.ne.s32.totalorder %s183, %s185
      %p192 = scmp.eq.s32.totalorder %s28, 1
      %p193 = por %p191, %p192
      %p194 = scmp.ne.s32.totalorder %s185, %s186
      %p195 = scmp.eq.s32.totalorder %s28, 0
      %p196 = por %p194, %p195
      %p197 = scmp.ne.s32.totalorder %s185, %s186
      %p198 = scmp.eq.s32.totalorder %s29, 1
      %p199 = por %p197, %p198
      %p201 = scmp.ne.s32.totalorder %s186, %s200
      %p202 = scmp.eq.s32.totalorder %s29, 0
      %p203 = por %p201, %p202
      %s204 = ssub.s32 %s30, %s42
      %s205 = ssub.s32 %s31, %s38
      %s206 = sor.u32 %s204, %s205
      %p207 = scmp.eq.s32.totalorder %s206, 0
      %s209 = sadd.s32 %s208, 1
      %s210 = scalar_select %p207, %s208, %s209
      %p213 = pneg %p207
      %p214 = scmp.eq.s32.totalorder %s23, 1
      %p215 = por %p213, %p214
      %p216 = scmp.ne.s32.totalorder %s208, %s211
      %p217 = scmp.eq.s32.totalorder %s23, 0
      %p218 = por %p216, %p217
      %p219 = scmp.ne.s32.totalorder %s208, %s211
      %p220 = scmp.eq.s32.totalorder %s28, 1
      %p221 = por %p219, %p220
      %p222 = scmp.ne.s32.totalorder %s211, %s212
      %p223 = scmp.eq.s32.totalorder %s28, 0
      %p224 = por %p222, %p223
      %p225 = scmp.ne.s32.totalorder %s211, %s212
      %p226 = scmp.eq.s32.totalorder %s29, 1
      %p227 = por %p225, %p226
      %p229 = scmp.ne.s32.totalorder %s212, %s228
      %p230 = scmp.eq.s32.totalorder %s29, 0
      %p231 = por %p229, %p230
      %p232 = scmp.le.s32.totalorder 1, %s23
      %p233 = scmp.lt.s32.totalorder %s23, 3
      %p234 = pnand %p232, %p233
      %p235 = pneg %p234
      // Predicated region
      $region9: #{tpu_custom_call.1} parent=5 // pred_check
        _
      $region10: #{tpu_custom_call.1} parent=5 // pred_check_branch
        %237 = sbr.rel (%p234) target = $region12
      $region11: #{tpu_custom_call.1} parent=5 // pred_region
        %s238 = ssub.s32 %s23, 1
        // Predicated region
        $region13: #{tpu_custom_call.1} parent=11 // pred_check
          %p239 = pneg %p112
        $region14: #{tpu_custom_call.1} parent=11 // pred_check_branch
          %241 = sbr.rel (%p239) target = $region16
        $region15: #{tpu_custom_call.1} parent=11 // pred_region
          _
        $region16: #{tpu_custom_call.1} parent=11 // pred_fallthru
          _
        // Predicated region
        $region17: #{tpu_custom_call.1} parent=11 // pred_check
          %p242 = pneg %p133
        $region18: #{tpu_custom_call.1} parent=11 // pred_check_branch
          %244 = sbr.rel (%p242) target = $region20
        $region19: #{tpu_custom_call.1} parent=11 // pred_region
          _
        $region20: #{tpu_custom_call.1} parent=11 // pred_fallthru
          _
        // Predicated region
        $region21: #{tpu_custom_call.1} parent=11 // pred_check
          %p245 = pneg %p154
        $region22: #{tpu_custom_call.1} parent=11 // pred_check_branch
          %247 = sbr.rel (%p245) target = $region24
        $region23: #{tpu_custom_call.1} parent=11 // pred_region
          _
        $region24: #{tpu_custom_call.1} parent=11 // pred_fallthru
          _
        // Predicated region
        $region25: #{tpu_custom_call.1} parent=11 // pred_check
          %p248 = pneg %p175
        $region26: #{tpu_custom_call.1} parent=11 // pred_check_branch
          %250 = sbr.rel (%p248) target = $region28
        $region27: #{tpu_custom_call.1} parent=11 // pred_region
          _
        $region28: #{tpu_custom_call.1} parent=11 // pred_fallthru
          _
        // Predicated region
        $region29: #{tpu_custom_call.1} parent=11 // pred_check
          %p251 = pneg %p196
        $region30: #{tpu_custom_call.1} parent=11 // pred_check_branch
          %253 = sbr.rel (%p251) target = $region32
        $region31: #{tpu_custom_call.1} parent=11 // pred_region
          _
        $region32: #{tpu_custom_call.1} parent=11 // pred_fallthru
          _
      $region12: #{tpu_custom_call.1} parent=5 // pred_fallthru
        _
      %p254 = scmp.lt.s32.totalorder %s23, 2
      // Predicated region
      $region33: #{tpu_custom_call.1} parent=5 // pred_check
        %p255 = pneg %p254
      $region34: #{tpu_custom_call.1} parent=5 // pred_check_branch
        %257 = sbr.rel (%p255) target = $region36
      $region35: #{tpu_custom_call.1} parent=5 // pred_region
        // Predicated region
        $region37: #{tpu_custom_call.1} parent=35 // pred_check
          %p258 = pneg %p57
        $region38: #{tpu_custom_call.1} parent=35 // pred_check_branch
          %260 = sbr.rel (%p258) target = $region40
        $region39: #{tpu_custom_call.1} parent=35 // pred_region
          %s261 = smul.u32 2, %s31
          %p262 = scmp.lt.s32.totalorder %s30, 1
          %s263 = scalar_select %p262, %s30, 1
          %p264 = scmp.lt.s32.totalorder %s261, 1
          %s265 = scalar_select %p264, %s261, 1
          %s266 = smul.addr %s263, 2
          %s267 = sadd.s32 %s265, %s266
          %s268 = smul.addr %s267, 4
          %s269 = scalar_lea.vmem %s0, %s268
          %s270 = smul.u32 2, %s31
        $region40: #{tpu_custom_call.1} parent=35 // pred_fallthru
          _
        // Predicated region
        $region41: #{tpu_custom_call.1} parent=35 // pred_check
          %p271 = pneg %p85
        $region42: #{tpu_custom_call.1} parent=35 // pred_check_branch
          %273 = sbr.rel (%p271) target = $region44
        $region43: #{tpu_custom_call.1} parent=35 // pred_region
          %s274 = sand.u32 %s75, 1
          %s275 = scalar_lea.sflag [#allocation5], %s274
          %s276 = sand.u32 %s75, 1
          %s277 = smul.addr %s276, 8
          %s278 = scalar_lea.vmem [#allocation4], %s277
          %s279 = smul.u32 2, %s31
          %s281 = ssub.s32 128, 128
          %282 = vsyncadd %s275, %s281
          %s283 = smul.addr %s30, 2
          %s284 = sadd.s32 %s279, %s283
          %s285 = smul.addr %s284, 64
          %s286 = scalar_lea.hbm %s1, %s285
          %s288 = sshll.u32 %s278, 4
          %s289 = int_to_ptr.vmem [resolvable:$true] %s288
          %291 = dma.hbm_to_vmem [thread:$0]  %s286, 128, %s289, %s275
        $region44: #{tpu_custom_call.1} parent=35 // pred_fallthru
          _
      $region36: #{tpu_custom_call.1} parent=5 // pred_fallthru
        _
      %p292 = scmp.le.s32.totalorder 1, %s23
      %p293 = scmp.lt.s32.totalorder %s23, 3
      %p294 = pnand %p292, %p293
      %p295 = pneg %p294
      // Predicated region
      $region45: #{tpu_custom_call.1} parent=5 // pred_check
        _
      $region46: #{tpu_custom_call.1} parent=5 // pred_check_branch
        %297 = sbr.rel (%p294) target = $region48
      $region47: #{tpu_custom_call.1} parent=5 // pred_region
        %s298 = ssub.s32 %s23, 1
        %s299 = sand.u32 %s78, 1
        %s300 = scalar_lea.sflag [#allocation5], %s299
        %s301 = sand.u32 %s78, 1
        %s302 = smul.addr %s301, 8
        %s303 = scalar_lea.vmem [#allocation4], %s302
        // Predicated region
        $region49: #{tpu_custom_call.1} parent=47 // pred_check
          %p304 = pneg %p91
        $region50: #{tpu_custom_call.1} parent=47 // pred_check_branch
          %306 = sbr.rel (%p304) target = $region52
        $region51: #{tpu_custom_call.1} parent=47 // pred_region
          %307 = dma.done %s300, 128
        $region52: #{tpu_custom_call.1} parent=47 // pred_fallthru
          _
        %s308 = smul.u32 2, %s33
        %p309 = scmp.lt.s32.totalorder %s32, 1
        %s310 = scalar_select %p309, %s32, 1
        %p311 = scmp.lt.s32.totalorder %s308, 1
        %s312 = scalar_select %p311, %s308, 1
        %s313 = smul.addr %s310, 2
        %s314 = sadd.s32 %s312, %s313
        %s315 = smul.addr %s314, 4
        %s316 = scalar_lea.vmem %s0, %s315
        %p317 = pneg %p63
        %p318 = pneg %p60
        %s319 = sand.u32 %s78, 1
        %s320 = scalar_lea.sflag [#allocation5], %s319
        %s321 = sand.u32 %s78, 1
        %s322 = smul.addr %s321, 8
        %s323 = scalar_lea.vmem [#allocation4], %s322
        %p324 = pneg %p91
        %p325 = pneg %p88
        %p326 = pneg %p112
        %p327 = pneg %p109
        %p328 = pneg %p133
        %p329 = pneg %p130
        %p330 = pneg %p154
        %p331 = pneg %p151
        %p332 = pneg %p175
        %p333 = pneg %p172
        %p334 = pneg %p196
        %p335 = pneg %p193
        %p336 = pneg %p224
        %p337 = pneg %p221
        %s338 = sand.u32 %s211, 1
        %s339 = scalar_lea.sflag [#allocation6], %s338
        %s340 = sand.u32 %s211, 1
        %s341 = smul.addr %s340, 16
        %s342 = scalar_lea.vmem [#allocation7], %s341
        %s343 = smul.u32 2, %s33
        %p344 = scmp.lt.s32.totalorder %s32, 1
        %s345 = scalar_select %p344, %s32, 1
        %p346 = scmp.lt.s32.totalorder %s343, 1
        %s347 = scalar_select %p346, %s343, 1
        %s348 = smul.addr %s345, 2
        %s349 = sadd.s32 %s347, %s348
        %s350 = smul.addr %s349, 4
        %s351 = scalar_lea.vmem %s0, %s350
        %s352 = smul.u32 2, %s33
        %s353 = smul.u32 2, %s33
        %s354 = smul.u32 2, %s33
        %v355 = vld [vmem:[%s351] sm:$0xff]
        %v356 = vld [vmem:[%s303] sm:$0xff]
        %v357 = vld [vmem:[%s2] sm:$0xff]
        %v358 = vld [vmem:[%s3] sm:$0xff]
        %v359 = vld [vmem:[%s4] sm:$0x1]
        %v360 = vld [vmem:[#allocation2] sm:$0x1]
        %v362 = vcombine.high %v356, %v356
        %vm363 = vcmask 31744
        %v365 = vsel %vm363, %v357, 0
        %vm367 = vcmask 1043456
        %v368 = vsel %vm367, %v356, 0
        %v370 = vsel %vm367, %v362, 0
        %372 = vmatprep.subr.mxu0 0.0
        %373 = vmatpush1.msra.mxu0 0.0
        %374 = vmatprep.subr.mxu0 0.0
        %375 = vmatpush1.msra.mxu0 0.0
        %376 = vmatprep.subr.mxu0 0.0
        %377 = vmatpush1.msra.mxu0 0.0
        %378 = vmatprep.subr.mxu0 0.0
        %379 = vmatpush1.msra.mxu0 0.0
        %380 = vmatprep.subr.mxu0 0.0
        %381 = vmatpush1.msra.mxu0 0.0
        %382 = vmatprep.subr.mxu0 0.0
        %383 = vmatpush1.msra.mxu0 0.0
        %384 = vmatprep.subr.mxu0 0.0
        %385 = vmatpush1.msra.mxu0 0.0
        %386 = vmatprep.subr.mxu0 0.0
        %387 = vmatpush1.msra.mxu0 0.0
        %388 = vmatprep.subr.mxu0 0.0
        %389 = vmatpush1.msra.mxu0 0.0
        %390 = vmatprep.subr.mxu0 0.0
        %391 = vmatpush1.msra.mxu0 0.0
        %392 = vmatprep.subr.mxu0 0.0
        %393 = vmatpush1.msra.mxu0 0.0
        %394 = vmatprep.subr.mxu0 0.0
        %395 = vmatpush1.msra.mxu0 0.0
        %396 = vmatprep.subr.mxu0 0.0
        %397 = vmatpush1.msra.mxu0 0.0
        %398 = vmatprep.subr.mxu0 0.0
        %399 = vmatpush1.msra.mxu0 0.0
        %400 = vmatprep.subr.mxu0 0.0
        %401 = vmatpush1.msra.mxu0 0.0
        %402 = vmatprep.subr.mxu0 %v370
        %403 = vmatpush1.msra.mxu0 %v368
        %404 = vmatprep.subr.mxu0 0.0
        %405 = vmatpush2.msra.mxu0 0.0
        %406 = vmatprep.subr.mxu0 0.0
        %407 = vmatpush2.msra.mxu0 0.0
        %408 = vmatprep.subr.mxu0 0.0
        %409 = vmatpush2.msra.mxu0 0.0
        %410 = vmatprep.subr.mxu0 0.0
        %411 = vmatpush2.msra.mxu0 0.0
        %412 = vmatprep.subr.mxu0 0.0
        %413 = vmatpush2.msra.mxu0 0.0
        %414 = vmatprep.subr.mxu0 0.0
        %415 = vmatpush2.msra.mxu0 0.0
        %416 = vmatprep.subr.mxu0 0.0
        %417 = vmatpush2.msra.mxu0 0.0
        %418 = vmatprep.subr.mxu0 0.0
        %419 = vmatpush2.msra.mxu0 0.0
        %420 = vmatprep.subr.mxu0 0.0
        %421 = vmatpush2.msra.mxu0 0.0
        %422 = vmatprep.subr.mxu0 0.0
        %423 = vmatpush2.msra.mxu0 0.0
        %424 = vmatprep.subr.mxu0 0.0
        %425 = vmatpush2.msra.mxu0 0.0
        %426 = vmatprep.subr.mxu0 0.0
        %427 = vmatpush2.msra.mxu0 0.0
        %428 = vmatprep.subr.mxu0 0.0
        %429 = vmatpush2.msra.mxu0 0.0
        %430 = vmatprep.subr.mxu0 0.0
        %431 = vmatpush2.msra.mxu0 0.0
        %432 = vmatprep.subr.mxu0 0.0
        %433 = vmatpush2.msra.mxu0 0.0
        %434 = vmatprep.subr.mxu0 0.0
        %435 = vmatpush2.msra.mxu0 0.0
        %436 = vmatprep.mubr.f32.mxu0 0.0
        %437 = vmatmul.mubr.f32.gmra.mxu0 %v365
        %v438 = vpop.f32.mrf.mxu0
        %v439 = vadd.f32 0.0, %v438
        %v440 = vpop.f32.mrf.mxu0
        %v441 = vadd.f32 0.0, %v440
        %442 = vdwg.mxu0
        %444 = vset.pattern.permute.xlu0 0
        %445 = vperm.xlu0 %444, %v358
        %v446 = vpop.permute.xlu0 %445
        %v449 = vcombine.high %v355, %v355
        %v450 = vsel %vm367, %v355, 0
        %v452 = vsel %vm367, %v449, 0
        %454 = vmatprep.subr.mxu0 0.0
        %455 = vmatpush1.msra.mxu0 0.0
        %456 = vmatprep.subr.mxu0 0.0
        %457 = vmatpush1.msra.mxu0 0.0
        %458 = vmatprep.subr.mxu0 0.0
        %459 = vmatpush1.msra.mxu0 0.0
        %460 = vmatprep.subr.mxu0 0.0
        %461 = vmatpush1.msra.mxu0 0.0
        %462 = vmatprep.subr.mxu0 0.0
        %463 = vmatpush1.msra.mxu0 0.0
        %464 = vmatprep.subr.mxu0 0.0
        %465 = vmatpush1.msra.mxu0 0.0
        %466 = vmatprep.subr.mxu0 0.0
        %467 = vmatpush1.msra.mxu0 0.0
        %468 = vmatprep.subr.mxu0 0.0
        %469 = vmatpush1.msra.mxu0 0.0
        %470 = vmatprep.subr.mxu0 0.0
        %471 = vmatpush1.msra.mxu0 0.0
        %472 = vmatprep.subr.mxu0 0.0
        %473 = vmatpush1.msra.mxu0 0.0
        %474 = vmatprep.subr.mxu0 0.0
        %475 = vmatpush1.msra.mxu0 0.0
        %476 = vmatprep.subr.mxu0 0.0
        %477 = vmatpush1.msra.mxu0 0.0
        %478 = vmatprep.subr.mxu0 0.0
        %479 = vmatpush1.msra.mxu0 0.0
        %480 = vmatprep.subr.mxu0 0.0
        %481 = vmatpush1.msra.mxu0 0.0
        %482 = vmatprep.subr.mxu0 0.0
        %483 = vmatpush1.msra.mxu0 0.0
        %484 = vmatprep.subr.mxu0 %v452
        %485 = vmatpush1.msra.mxu0 %v450
        %486 = vmatprep.subr.mxu0 0.0
        %487 = vmatpush2.msra.mxu0 0.0
        %488 = vmatprep.subr.mxu0 0.0
        %489 = vmatpush2.msra.mxu0 0.0
        %490 = vmatprep.subr.mxu0 0.0
        %491 = vmatpush2.msra.mxu0 0.0
        %492 = vmatprep.subr.mxu0 0.0
        %493 = vmatpush2.msra.mxu0 0.0
        %494 = vmatprep.subr.mxu0 0.0
        %495 = vmatpush2.msra.mxu0 0.0
        %496 = vmatprep.subr.mxu0 0.0
        %497 = vmatpush2.msra.mxu0 0.0
        %498 = vmatprep.subr.mxu0 0.0
        %499 = vmatpush2.msra.mxu0 0.0
        %500 = vmatprep.subr.mxu0 0.0
        %501 = vmatpush2.msra.mxu0 0.0
        %502 = vmatprep.subr.mxu0 0.0
        %503 = vmatpush2.msra.mxu0 0.0
        %504 = vmatprep.subr.mxu0 0.0
        %505 = vmatpush2.msra.mxu0 0.0
        %506 = vmatprep.subr.mxu0 0.0
        %507 = vmatpush2.msra.mxu0 0.0
        %508 = vmatprep.subr.mxu0 0.0
        %509 = vmatpush2.msra.mxu0 0.0
        %510 = vmatprep.subr.mxu0 0.0
        %511 = vmatpush2.msra.mxu0 0.0
        %512 = vmatprep.subr.mxu0 0.0
        %513 = vmatpush2.msra.mxu0 0.0
        %514 = vmatprep.subr.mxu0 0.0
        %515 = vmatpush2.msra.mxu0 0.0
        %516 = vmatprep.subr.mxu0 0.0
        %517 = vmatpush2.msra.mxu0 0.0
        %518 = vmatprep.mubr.f32.mxu0 0.0
        %519 = vmatmul.mubr.f32.gmra.mxu0 %v365
        %v520 = vpop.f32.mrf.mxu0
        %v521 = vadd.f32 %v446, %v520
        %v522 = vpop.f32.mrf.mxu0
        %v523 = vadd.f32 %v446, %v522
        %524 = vdwg.mxu0
        %v525 = vlaneseq
        %v526 = vand.u32 %v525, 127
        %v527 = vadd.s32 %v526, 128
        %vm528 = vcmp.lt.s32.totalorder %v526, 0
        %v529 = vsub.s32 0, %v526
        %v530 = vsel %vm528, %v529, %v526
        %v531 = vshrl.u32 %v530, 4
        %v532 = vand.u32 %v530, 15
        %v533 = vsub.s32 0, %v532
        %v534 = vsel %vm528, %v533, %v532
        %vm535 = vcmp.lt.s32.totalorder %v527, 0
        %v536 = vsub.s32 0, %v527
        %v537 = vsel %vm535, %v536, %v527
        %v538 = vshrl.u32 %v537, 4
        %v539 = vand.u32 %v537, 15
        %v540 = vsub.s32 0, %v539
        %v541 = vsel %vm535, %v540, %v539
        %vm542 = vcmp.ne.s32.totalorder %v534, 0
        %vm543 = vcmp.ne.s32.totalorder %v541, 0
        %vm544 = vcmp.lt.s32.totalorder %v534, 0
        %vm545 = vcmp.lt.s32.totalorder %v541, 0
        %vm546 = vmand %vm544, %vm542
        %vm547 = vmand %vm545, %vm543
        %v548 = vadd.s32 %v534, 16
        %v549 = vadd.s32 %v541, 16
        %v550 = vsel %vm546, %v548, %v534
        %v551 = vsel %vm547, %v549, %v541
        %v552 = vld [vmem:[#allocation3] sm:$0x1]
        %554 = vset.pattern.permute.xlu0 0
        %555 = vperm.xlu0 %554, %v552
        %v556 = vpop.permute.xlu0 %555
        %v558 = vlaneseq
        %v559 = vshrl.u32 %v558, 7
        %v560 = vsub.s32 0, %v559
        %v561 = vrot.slane %v556, %v560
        %v562 = vsub.f32 %v521, %v439
        %v563 = vsub.f32 %v523, %v441
        %v564 = vmax.f32 %v562, 0.0
        %v565 = vmax.f32 %v563, 0.0
        %567 = vset.pattern.permute.xlu0 0
        %568 = vperm.xlu0 %567, %v360
        %v569 = vpop.permute.xlu0 %568
        %v571 = vlaneseq
        %v572 = vshrl.u32 %v571, 7
        %v573 = vsub.s32 0, %v572
        %v574 = vrot.slane %v569, %v573
        %vm575 = vcmask 64512
        %v577 = vsel %vm575, %v359, 0
        %579 = vmatprep.subr.mxu0 0.0
        %580 = vmatpush1.msra.mxu0 0.0
        %581 = vmatprep.subr.mxu0 0.0
        %582 = vmatpush1.msra.mxu0 0.0
        %583 = vmatprep.subr.mxu0 0.0
        %584 = vmatpush1.msra.mxu0 0.0
        %585 = vmatprep.subr.mxu0 0.0
        %586 = vmatpush1.msra.mxu0 0.0
        %587 = vmatprep.subr.mxu0 0.0
        %588 = vmatpush1.msra.mxu0 0.0
        %589 = vmatprep.subr.mxu0 0.0
        %590 = vmatpush1.msra.mxu0 0.0
        %591 = vmatprep.subr.mxu0 0.0
        %592 = vmatpush1.msra.mxu0 0.0
        %593 = vmatprep.subr.mxu0 0.0
        %594 = vmatpush1.msra.mxu0 0.0
        %595 = vmatprep.subr.mxu0 0.0
        %596 = vmatpush1.msra.mxu0 0.0
        %597 = vmatprep.subr.mxu0 0.0
        %598 = vmatpush1.msra.mxu0 0.0
        %599 = vmatprep.subr.mxu0 0.0
        %600 = vmatpush1.msra.mxu0 0.0
        %601 = vmatprep.subr.mxu0 0.0
        %602 = vmatpush1.msra.mxu0 0.0
        %603 = vmatprep.subr.mxu0 0.0
        %604 = vmatpush1.msra.mxu0 0.0
        %605 = vmatprep.subr.mxu0 0.0
        %606 = vmatpush1.msra.mxu0 0.0
        %607 = vmatprep.subr.mxu0 0.0
        %608 = vmatpush1.msra.mxu0 0.0
        %609 = vmatprep.subr.mxu0 %v565
        %610 = vmatpush1.msra.mxu0 %v564
        %611 = vmatprep.subr.mxu0 0.0
        %612 = vmatpush2.msra.mxu0 0.0
        %613 = vmatprep.subr.mxu0 0.0
        %614 = vmatpush2.msra.mxu0 0.0
        %615 = vmatprep.subr.mxu0 0.0
        %616 = vmatpush2.msra.mxu0 0.0
        %617 = vmatprep.subr.mxu0 0.0
        %618 = vmatpush2.msra.mxu0 0.0
        %619 = vmatprep.subr.mxu0 0.0
        %620 = vmatpush2.msra.mxu0 0.0
        %621 = vmatprep.subr.mxu0 0.0
        %622 = vmatpush2.msra.mxu0 0.0
        %623 = vmatprep.subr.mxu0 0.0
        %624 = vmatpush2.msra.mxu0 0.0
        %625 = vmatprep.subr.mxu0 0.0
        %626 = vmatpush2.msra.mxu0 0.0
        %627 = vmatprep.subr.mxu0 0.0
        %628 = vmatpush2.msra.mxu0 0.0
        %629 = vmatprep.subr.mxu0 0.0
        %630 = vmatpush2.msra.mxu0 0.0
        %631 = vmatprep.subr.mxu0 0.0
        %632 = vmatpush2.msra.mxu0 0.0
        %633 = vmatprep.subr.mxu0 0.0
        %634 = vmatpush2.msra.mxu0 0.0
        %635 = vmatprep.subr.mxu0 0.0
        %636 = vmatpush2.msra.mxu0 0.0
        %637 = vmatprep.subr.mxu0 0.0
        %638 = vmatpush2.msra.mxu0 0.0
        %639 = vmatprep.subr.mxu0 0.0
        %640 = vmatpush2.msra.mxu0 0.0
        %641 = vmatprep.subr.mxu0 0.0
        %642 = vmatpush2.msra.mxu0 0.0
        %643 = vmatprep.mubr.f32.mxu0 0.0
        %644 = vmatmul.mubr.f32.gmra.mxu0 %v577
        %v645 = vpop.f32.mrf.mxu0
        %v646 = vadd.f32 %v574, %v645
        %v647 = vpop.f32.mrf.mxu0
        %v648 = vadd.f32 %v574, %v647
        %649 = vdwg.mxu0
        %v652 = vcombine.low %v646, %v648
        %v654 = vunpack.c.l.s4 1966171168
        %v655 = vunpack.c.0.s8 %v654
        %v656 = vlaneseq
        %v657 = vshrl.u32 %v656, 7
        %v658 = vsub.s32 %v655, %v657
        %v659 = vrot.slane %v652, %v658
        %v661 = vunpack.c.l.s4 1966171168
        %v662 = vunpack.c.0.s8 %v661
        %v663 = vlaneseq
        %v664 = vshrl.u32 %v663, 7
        %v665 = vsub.s32 %v662, %v664
        %v666 = vrot.slane %v659, %v665
        %v668 = vlaneseq
        %vm669 = vcmp.ge.s32.totalorder %v668, 0
        %vm670 = vcmp.lt.s32.totalorder %v668, 256
        %vm671 = vmand %vm669, %vm670
        %672 = vst.msk [vmem:[%s342] ss:$8 sm:$0x3] %vm671, %v666
        %673 = vst.msk [vmem:[%s342] ss:$8 sm:$0x0] %vm671, %v666
        %674 = vrot.lane.b32.xlu0 %v439, 1
        %v675 = vpop.permute.xlu0 %674
        %676 = vrot.lane.b32.xlu0 %v441, 1
        %v677 = vpop.permute.xlu0 %676
        %vm678 = vcmp.lt.s32.totalorder %v526, 1
        %v679 = vsel %vm678, %v675, %v677
        %v680 = vsel %vm678, %v677, %v675
        %v681 = vsub.f32 %v521, %v680
        %v682 = vsub.f32 %v523, %v679
        %v683 = vmax.f32 %v681, 0.0
        %v684 = vmax.f32 %v682, 0.0
        %685 = vmatprep.subr.mxu0 0.0
        %686 = vmatpush1.msra.mxu0 0.0
        %687 = vmatprep.subr.mxu0 0.0
        %688 = vmatpush1.msra.mxu0 0.0
        %689 = vmatprep.subr.mxu0 0.0
        %690 = vmatpush1.msra.mxu0 0.0
        %691 = vmatprep.subr.mxu0 0.0
        %692 = vmatpush1.msra.mxu0 0.0
        %693 = vmatprep.subr.mxu0 0.0
        %694 = vmatpush1.msra.mxu0 0.0
        %695 = vmatprep.subr.mxu0 0.0
        %696 = vmatpush1.msra.mxu0 0.0
        %697 = vmatprep.subr.mxu0 0.0
        %698 = vmatpush1.msra.mxu0 0.0
        %699 = vmatprep.subr.mxu0 0.0
        %700 = vmatpush1.msra.mxu0 0.0
        %701 = vmatprep.subr.mxu0 0.0
        %702 = vmatpush1.msra.mxu0 0.0
        %703 = vmatprep.subr.mxu0 0.0
        %704 = vmatpush1.msra.mxu0 0.0
        %705 = vmatprep.subr.mxu0 0.0
        %706 = vmatpush1.msra.mxu0 0.0
        %707 = vmatprep.subr.mxu0 0.0
        %708 = vmatpush1.msra.mxu0 0.0
        %709 = vmatprep.subr.mxu0 0.0
        %710 = vmatpush1.msra.mxu0 0.0
        %711 = vmatprep.subr.mxu0 0.0
        %712 = vmatpush1.msra.mxu0 0.0
        %713 = vmatprep.subr.mxu0 0.0
        %714 = vmatpush1.msra.mxu0 0.0
        %715 = vmatprep.subr.mxu0 %v684
        %716 = vmatpush1.msra.mxu0 %v683
        %717 = vmatprep.subr.mxu0 0.0
        %718 = vmatpush2.msra.mxu0 0.0
        %719 = vmatprep.subr.mxu0 0.0
        %720 = vmatpush2.msra.mxu0 0.0
        %721 = vmatprep.subr.mxu0 0.0
        %722 = vmatpush2.msra.mxu0 0.0
        %723 = vmatprep.subr.mxu0 0.0
        %724 = vmatpush2.msra.mxu0 0.0
        %725 = vmatprep.subr.mxu0 0.0
        %726 = vmatpush2.msra.mxu0 0.0
        %727 = vmatprep.subr.mxu0 0.0
        %728 = vmatpush2.msra.mxu0 0.0
        %729 = vmatprep.subr.mxu0 0.0
        %730 = vmatpush2.msra.mxu0 0.0
        %731 = vmatprep.subr.mxu0 0.0
        %732 = vmatpush2.msra.mxu0 0.0
        %733 = vmatprep.subr.mxu0 0.0
        %734 = vmatpush2.msra.mxu0 0.0
        %735 = vmatprep.subr.mxu0 0.0
        %736 = vmatpush2.msra.mxu0 0.0
        %737 = vmatprep.subr.mxu0 0.0
        %738 = vmatpush2.msra.mxu0 0.0
        %739 = vmatprep.subr.mxu0 0.0
        %740 = vmatpush2.msra.mxu0 0.0
        %741 = vmatprep.subr.mxu0 0.0
        %742 = vmatpush2.msra.mxu0 0.0
        %743 = vmatprep.subr.mxu0 0.0
        %744 = vmatpush2.msra.mxu0 0.0
        %745 = vmatprep.subr.mxu0 0.0
        %746 = vmatpush2.msra.mxu0 0.0
        %747 = vmatprep.subr.mxu0 0.0
        %748 = vmatpush2.msra.mxu0 0.0
        %749 = vmatprep.mubr.f32.mxu0 0.0
        %750 = vmatmul.mubr.f32.gmra.mxu0 %v577
        %v751 = vpop.f32.mrf.mxu0
        %v752 = vadd.f32 %v574, %v751
        %v753 = vpop.f32.mrf.mxu0
        %v754 = vadd.f32 %v574, %v753
        %755 = vdwg.mxu0
        %vm756 = vcmp.ge.s32.totalorder %v550, 1
        %vm757 = vcmp.ge.s32.totalorder %v551, 1
        %v758 = vsel %vm756, %v752, %v561
        %v759 = vsel %vm757, %v754, %v561
        %v762 = vcombine.low %v758, %v759
        %v764 = vunpack.c.l.s4 1966171168
        %v765 = vunpack.c.0.s8 %v764
        %v766 = vlaneseq
        %v767 = vshrl.u32 %v766, 7
        %v768 = vsub.s32 %v765, %v767
        %v769 = vrot.slane %v762, %v768
        %v771 = vunpack.c.l.s4 1966171168
        %v772 = vunpack.c.0.s8 %v771
        %v773 = vlaneseq
        %v774 = vshrl.u32 %v773, 7
        %v775 = vsub.s32 %v772, %v774
        %v776 = vrot.slane %v769, %v775
        %s778 = scalar_lea.vmem %s342, 1 [#allocation7]
        %779 = vst.msk [vmem:[%s778] ss:$8 sm:$0x3] %vm671, %v776
        %780 = vst.msk [vmem:[%s778] ss:$8 sm:$0x0] %vm671, %v776
        %781 = vrot.lane.b32.xlu0 %v439, 2
        %v782 = vpop.permute.xlu0 %781
        %783 = vrot.lane.b32.xlu0 %v441, 2
        %v784 = vpop.permute.xlu0 %783
        %vm785 = vcmp.lt.s32.totalorder %v526, 2
        %v786 = vsel %vm785, %v782, %v784
        %v787 = vsel %vm785, %v784, %v782
        %v788 = vsub.f32 %v521, %v787
        %v789 = vsub.f32 %v523, %v786
        %v790 = vmax.f32 %v788, 0.0
        %v791 = vmax.f32 %v789, 0.0
        %792 = vmatprep.subr.mxu0 0.0
        %793 = vmatpush1.msra.mxu0 0.0
        %794 = vmatprep.subr.mxu0 0.0
        %795 = vmatpush1.msra.mxu0 0.0
        %796 = vmatprep.subr.mxu0 0.0
        %797 = vmatpush1.msra.mxu0 0.0
        %798 = vmatprep.subr.mxu0 0.0
        %799 = vmatpush1.msra.mxu0 0.0
        %800 = vmatprep.subr.mxu0 0.0
        %801 = vmatpush1.msra.mxu0 0.0
        %802 = vmatprep.subr.mxu0 0.0
        %803 = vmatpush1.msra.mxu0 0.0
        %804 = vmatprep.subr.mxu0 0.0
        %805 = vmatpush1.msra.mxu0 0.0
        %806 = vmatprep.subr.mxu0 0.0
        %807 = vmatpush1.msra.mxu0 0.0
        %808 = vmatprep.subr.mxu0 0.0
        %809 = vmatpush1.msra.mxu0 0.0
        %810 = vmatprep.subr.mxu0 0.0
        %811 = vmatpush1.msra.mxu0 0.0
        %812 = vmatprep.subr.mxu0 0.0
        %813 = vmatpush1.msra.mxu0 0.0
        %814 = vmatprep.subr.mxu0 0.0
        %815 = vmatpush1.msra.mxu0 0.0
        %816 = vmatprep.subr.mxu0 0.0
        %817 = vmatpush1.msra.mxu0 0.0
        %818 = vmatprep.subr.mxu0 0.0
        %819 = vmatpush1.msra.mxu0 0.0
        %820 = vmatprep.subr.mxu0 0.0
        %821 = vmatpush1.msra.mxu0 0.0
        %822 = vmatprep.subr.mxu0 %v791
        %823 = vmatpush1.msra.mxu0 %v790
        %824 = vmatprep.subr.mxu0 0.0
        %825 = vmatpush2.msra.mxu0 0.0
        %826 = vmatprep.subr.mxu0 0.0
        %827 = vmatpush2.msra.mxu0 0.0
        %828 = vmatprep.subr.mxu0 0.0
        %829 = vmatpush2.msra.mxu0 0.0
        %830 = vmatprep.subr.mxu0 0.0
        %831 = vmatpush2.msra.mxu0 0.0
        %832 = vmatprep.subr.mxu0 0.0
        %833 = vmatpush2.msra.mxu0 0.0
        %834 = vmatprep.subr.mxu0 0.0
        %835 = vmatpush2.msra.mxu0 0.0
        %836 = vmatprep.subr.mxu0 0.0
        %837 = vmatpush2.msra.mxu0 0.0
        %838 = vmatprep.subr.mxu0 0.0
        %839 = vmatpush2.msra.mxu0 0.0
        %840 = vmatprep.subr.mxu0 0.0
        %841 = vmatpush2.msra.mxu0 0.0
        %842 = vmatprep.subr.mxu0 0.0
        %843 = vmatpush2.msra.mxu0 0.0
        %844 = vmatprep.subr.mxu0 0.0
        %845 = vmatpush2.msra.mxu0 0.0
        %846 = vmatprep.subr.mxu0 0.0
        %847 = vmatpush2.msra.mxu0 0.0
        %848 = vmatprep.subr.mxu0 0.0
        %849 = vmatpush2.msra.mxu0 0.0
        %850 = vmatprep.subr.mxu0 0.0
        %851 = vmatpush2.msra.mxu0 0.0
        %852 = vmatprep.subr.mxu0 0.0
        %853 = vmatpush2.msra.mxu0 0.0
        %854 = vmatprep.subr.mxu0 0.0
        %855 = vmatpush2.msra.mxu0 0.0
        %856 = vmatprep.mubr.f32.mxu0 0.0
        %857 = vmatmul.mubr.f32.gmra.mxu0 %v577
        %v858 = vpop.f32.mrf.mxu0
        %v859 = vadd.f32 %v574, %v858
        %v860 = vpop.f32.mrf.mxu0
        %v861 = vadd.f32 %v574, %v860
        %862 = vdwg.mxu0
        %vm863 = vcmp.ge.s32.totalorder %v550, 2
        %vm864 = vcmp.ge.s32.totalorder %v551, 2
        %v865 = vsel %vm863, %v859, %v561
        %v866 = vsel %vm864, %v861, %v561
        %v869 = vcombine.low %v865, %v866
        %v871 = vunpack.c.l.s4 1966171168
        %v872 = vunpack.c.0.s8 %v871
        %v873 = vlaneseq
        %v874 = vshrl.u32 %v873, 7
        %v875 = vsub.s32 %v872, %v874
        %v876 = vrot.slane %v869, %v875
        %v878 = vunpack.c.l.s4 1966171168
        %v879 = vunpack.c.0.s8 %v878
        %v880 = vlaneseq
        %v881 = vshrl.u32 %v880, 7
        %v882 = vsub.s32 %v879, %v881
        %v883 = vrot.slane %v876, %v882
        %s885 = scalar_lea.vmem %s342, 2 [#allocation7]
        %886 = vst.msk [vmem:[%s885] ss:$8 sm:$0x3] %vm671, %v883
        %887 = vst.msk [vmem:[%s885] ss:$8 sm:$0x0] %vm671, %v883
        %888 = vrot.lane.b32.xlu0 %v439, 3
        %v889 = vpop.permute.xlu0 %888
        %890 = vrot.lane.b32.xlu0 %v441, 3
        %v891 = vpop.permute.xlu0 %890
        %vm892 = vcmp.lt.s32.totalorder %v526, 3
        %v893 = vsel %vm892, %v889, %v891
        %v894 = vsel %vm892, %v891, %v889
        %v895 = vsub.f32 %v521, %v894
        %v896 = vsub.f32 %v523, %v893
        %v897 = vmax.f32 %v895, 0.0
        %v898 = vmax.f32 %v896, 0.0
        %899 = vmatprep.subr.mxu0 0.0
        %900 = vmatpush1.msra.mxu0 0.0
        %901 = vmatprep.subr.mxu0 0.0
        %902 = vmatpush1.msra.mxu0 0.0
        %903 = vmatprep.subr.mxu0 0.0
        %904 = vmatpush1.msra.mxu0 0.0
        %905 = vmatprep.subr.mxu0 0.0
        %906 = vmatpush1.msra.mxu0 0.0
        %907 = vmatprep.subr.mxu0 0.0
        %908 = vmatpush1.msra.mxu0 0.0
        %909 = vmatprep.subr.mxu0 0.0
        %910 = vmatpush1.msra.mxu0 0.0
        %911 = vmatprep.subr.mxu0 0.0
        %912 = vmatpush1.msra.mxu0 0.0
        %913 = vmatprep.subr.mxu0 0.0
        %914 = vmatpush1.msra.mxu0 0.0
        %915 = vmatprep.subr.mxu0 0.0
        %916 = vmatpush1.msra.mxu0 0.0
        %917 = vmatprep.subr.mxu0 0.0
        %918 = vmatpush1.msra.mxu0 0.0
        %919 = vmatprep.subr.mxu0 0.0
        %920 = vmatpush1.msra.mxu0 0.0
        %921 = vmatprep.subr.mxu0 0.0
        %922 = vmatpush1.msra.mxu0 0.0
        %923 = vmatprep.subr.mxu0 0.0
        %924 = vmatpush1.msra.mxu0 0.0
        %925 = vmatprep.subr.mxu0 0.0
        %926 = vmatpush1.msra.mxu0 0.0
        %927 = vmatprep.subr.mxu0 0.0
        %928 = vmatpush1.msra.mxu0 0.0
        %929 = vmatprep.subr.mxu0 %v898
        %930 = vmatpush1.msra.mxu0 %v897
        %931 = vmatprep.subr.mxu0 0.0
        %932 = vmatpush2.msra.mxu0 0.0
        %933 = vmatprep.subr.mxu0 0.0
        %934 = vmatpush2.msra.mxu0 0.0
        %935 = vmatprep.subr.mxu0 0.0
        %936 = vmatpush2.msra.mxu0 0.0
        %937 = vmatprep.subr.mxu0 0.0
        %938 = vmatpush2.msra.mxu0 0.0
        %939 = vmatprep.subr.mxu0 0.0
        %940 = vmatpush2.msra.mxu0 0.0
        %941 = vmatprep.subr.mxu0 0.0
        %942 = vmatpush2.msra.mxu0 0.0
        %943 = vmatprep.subr.mxu0 0.0
        %944 = vmatpush2.msra.mxu0 0.0
        %945 = vmatprep.subr.mxu0 0.0
        %946 = vmatpush2.msra.mxu0 0.0
        %947 = vmatprep.subr.mxu0 0.0
        %948 = vmatpush2.msra.mxu0 0.0
        %949 = vmatprep.subr.mxu0 0.0
        %950 = vmatpush2.msra.mxu0 0.0
        %951 = vmatprep.subr.mxu0 0.0
        %952 = vmatpush2.msra.mxu0 0.0
        %953 = vmatprep.subr.mxu0 0.0
        %954 = vmatpush2.msra.mxu0 0.0
        %955 = vmatprep.subr.mxu0 0.0
        %956 = vmatpush2.msra.mxu0 0.0
        %957 = vmatprep.subr.mxu0 0.0
        %958 = vmatpush2.msra.mxu0 0.0
        %959 = vmatprep.subr.mxu0 0.0
        %960 = vmatpush2.msra.mxu0 0.0
        %961 = vmatprep.subr.mxu0 0.0
        %962 = vmatpush2.msra.mxu0 0.0
        %963 = vmatprep.mubr.f32.mxu0 0.0
        %964 = vmatmul.mubr.f32.gmra.mxu0 %v577
        %v965 = vpop.f32.mrf.mxu0
        %v966 = vadd.f32 %v574, %v965
        %v967 = vpop.f32.mrf.mxu0
        %v968 = vadd.f32 %v574, %v967
        %969 = vdwg.mxu0
        %vm970 = vcmp.ge.s32.totalorder %v550, 3
        %vm971 = vcmp.ge.s32.totalorder %v551, 3
        %v972 = vsel %vm970, %v966, %v561
        %v973 = vsel %vm971, %v968, %v561
        %v976 = vcombine.low %v972, %v973
        %v978 = vunpack.c.l.s4 1966171168
        %v979 = vunpack.c.0.s8 %v978
        %v980 = vlaneseq
        %v981 = vshrl.u32 %v980, 7
        %v982 = vsub.s32 %v979, %v981
        %v983 = vrot.slane %v976, %v982
        %v985 = vunpack.c.l.s4 1966171168
        %v986 = vunpack.c.0.s8 %v985
        %v987 = vlaneseq
        %v988 = vshrl.u32 %v987, 7
        %v989 = vsub.s32 %v986, %v988
        %v990 = vrot.slane %v983, %v989
        %s992 = scalar_lea.vmem %s342, 3 [#allocation7]
        %993 = vst.msk [vmem:[%s992] ss:$8 sm:$0x3] %vm671, %v990
        %994 = vst.msk [vmem:[%s992] ss:$8 sm:$0x0] %vm671, %v990
        %995 = vrot.lane.b32.xlu0 %v439, 4
        %v996 = vpop.permute.xlu0 %995
        %997 = vrot.lane.b32.xlu0 %v441, 4
        %v998 = vpop.permute.xlu0 %997
        %vm999 = vcmp.lt.s32.totalorder %v526, 4
        %v1000 = vsel %vm999, %v996, %v998
        %v1001 = vsel %vm999, %v998, %v996
        %v1002 = vsub.f32 %v521, %v1001
        %v1003 = vsub.f32 %v523, %v1000
        %v1004 = vmax.f32 %v1002, 0.0
        %v1005 = vmax.f32 %v1003, 0.0
        %1006 = vmatprep.subr.mxu0 0.0
        %1007 = vmatpush1.msra.mxu0 0.0
        %1008 = vmatprep.subr.mxu0 0.0
        %1009 = vmatpush1.msra.mxu0 0.0
        %1010 = vmatprep.subr.mxu0 0.0
        %1011 = vmatpush1.msra.mxu0 0.0
        %1012 = vmatprep.subr.mxu0 0.0
        %1013 = vmatpush1.msra.mxu0 0.0
        %1014 = vmatprep.subr.mxu0 0.0
        %1015 = vmatpush1.msra.mxu0 0.0
        %1016 = vmatprep.subr.mxu0 0.0
        %1017 = vmatpush1.msra.mxu0 0.0
        %1018 = vmatprep.subr.mxu0 0.0
        %1019 = vmatpush1.msra.mxu0 0.0
        %1020 = vmatprep.subr.mxu0 0.0
        %1021 = vmatpush1.msra.mxu0 0.0
        %1022 = vmatprep.subr.mxu0 0.0
        %1023 = vmatpush1.msra.mxu0 0.0
        %1024 = vmatprep.subr.mxu0 0.0
        %1025 = vmatpush1.msra.mxu0 0.0
        %1026 = vmatprep.subr.mxu0 0.0
        %1027 = vmatpush1.msra.mxu0 0.0
        %1028 = vmatprep.subr.mxu0 0.0
        %1029 = vmatpush1.msra.mxu0 0.0
        %1030 = vmatprep.subr.mxu0 0.0
        %1031 = vmatpush1.msra.mxu0 0.0
        %1032 = vmatprep.subr.mxu0 0.0
        %1033 = vmatpush1.msra.mxu0 0.0
        %1034 = vmatprep.subr.mxu0 0.0
        %1035 = vmatpush1.msra.mxu0 0.0
        %1036 = vmatprep.subr.mxu0 %v1005
        %1037 = vmatpush1.msra.mxu0 %v1004
        %1038 = vmatprep.subr.mxu0 0.0
        %1039 = vmatpush2.msra.mxu0 0.0
        %1040 = vmatprep.subr.mxu0 0.0
        %1041 = vmatpush2.msra.mxu0 0.0
        %1042 = vmatprep.subr.mxu0 0.0
        %1043 = vmatpush2.msra.mxu0 0.0
        %1044 = vmatprep.subr.mxu0 0.0
        %1045 = vmatpush2.msra.mxu0 0.0
        %1046 = vmatprep.subr.mxu0 0.0
        %1047 = vmatpush2.msra.mxu0 0.0
        %1048 = vmatprep.subr.mxu0 0.0
        %1049 = vmatpush2.msra.mxu0 0.0
        %1050 = vmatprep.subr.mxu0 0.0
        %1051 = vmatpush2.msra.mxu0 0.0
        %1052 = vmatprep.subr.mxu0 0.0
        %1053 = vmatpush2.msra.mxu0 0.0
        %1054 = vmatprep.subr.mxu0 0.0
        %1055 = vmatpush2.msra.mxu0 0.0
        %1056 = vmatprep.subr.mxu0 0.0
        %1057 = vmatpush2.msra.mxu0 0.0
        %1058 = vmatprep.subr.mxu0 0.0
        %1059 = vmatpush2.msra.mxu0 0.0
        %1060 = vmatprep.subr.mxu0 0.0
        %1061 = vmatpush2.msra.mxu0 0.0
        %1062 = vmatprep.subr.mxu0 0.0
        %1063 = vmatpush2.msra.mxu0 0.0
        %1064 = vmatprep.subr.mxu0 0.0
        %1065 = vmatpush2.msra.mxu0 0.0
        %1066 = vmatprep.subr.mxu0 0.0
        %1067 = vmatpush2.msra.mxu0 0.0
        %1068 = vmatprep.subr.mxu0 0.0
        %1069 = vmatpush2.msra.mxu0 0.0
        %1070 = vmatprep.mubr.f32.mxu0 0.0
        %1071 = vmatmul.mubr.f32.gmra.mxu0 %v577
        %v1072 = vpop.f32.mrf.mxu0
        %v1073 = vadd.f32 %v574, %v1072
        %v1074 = vpop.f32.mrf.mxu0
        %v1075 = vadd.f32 %v574, %v1074
        %1076 = vdwg.mxu0
        %vm1077 = vcmp.ge.s32.totalorder %v550, 4
        %vm1078 = vcmp.ge.s32.totalorder %v551, 4
        %v1079 = vsel %vm1077, %v1073, %v561
        %v1080 = vsel %vm1078, %v1075, %v561
        %v1083 = vcombine.low %v1079, %v1080
        %v1085 = vunpack.c.l.s4 1966171168
        %v1086 = vunpack.c.0.s8 %v1085
        %v1087 = vlaneseq
        %v1088 = vshrl.u32 %v1087, 7
        %v1089 = vsub.s32 %v1086, %v1088
        %v1090 = vrot.slane %v1083, %v1089
        %v1092 = vunpack.c.l.s4 1966171168
        %v1093 = vunpack.c.0.s8 %v1092
        %v1094 = vlaneseq
        %v1095 = vshrl.u32 %v1094, 7
        %v1096 = vsub.s32 %v1093, %v1095
        %v1097 = vrot.slane %v1090, %v1096
        %s1099 = scalar_lea.vmem %s342, 4 [#allocation7]
        %1100 = vst.msk [vmem:[%s1099] ss:$8 sm:$0x3] %vm671, %v1097
        %1101 = vst.msk [vmem:[%s1099] ss:$8 sm:$0x0] %vm671, %v1097
        %1102 = vrot.lane.b32.xlu0 %v439, 5
        %v1103 = vpop.permute.xlu0 %1102
        %1104 = vrot.lane.b32.xlu0 %v441, 5
        %v1105 = vpop.permute.xlu0 %1104
        %vm1106 = vcmp.lt.s32.totalorder %v526, 5
        %v1107 = vsel %vm1106, %v1103, %v1105
        %v1108 = vsel %vm1106, %v1105, %v1103
        %v1109 = vsub.f32 %v521, %v1108
        %v1110 = vsub.f32 %v523, %v1107
        %v1111 = vmax.f32 %v1109, 0.0
        %v1112 = vmax.f32 %v1110, 0.0
        %1113 = vmatprep.subr.mxu0 0.0
        %1114 = vmatpush1.msra.mxu0 0.0
        %1115 = vmatprep.subr.mxu0 0.0
        %1116 = vmatpush1.msra.mxu0 0.0
        %1117 = vmatprep.subr.mxu0 0.0
        %1118 = vmatpush1.msra.mxu0 0.0
        %1119 = vmatprep.subr.mxu0 0.0
        %1120 = vmatpush1.msra.mxu0 0.0
        %1121 = vmatprep.subr.mxu0 0.0
        %1122 = vmatpush1.msra.mxu0 0.0
        %1123 = vmatprep.subr.mxu0 0.0
        %1124 = vmatpush1.msra.mxu0 0.0
        %1125 = vmatprep.subr.mxu0 0.0
        %1126 = vmatpush1.msra.mxu0 0.0
        %1127 = vmatprep.subr.mxu0 0.0
        %1128 = vmatpush1.msra.mxu0 0.0
        %1129 = vmatprep.subr.mxu0 0.0
        %1130 = vmatpush1.msra.mxu0 0.0
        %1131 = vmatprep.subr.mxu0 0.0
        %1132 = vmatpush1.msra.mxu0 0.0
        %1133 = vmatprep.subr.mxu0 0.0
        %1134 = vmatpush1.msra.mxu0 0.0
        %1135 = vmatprep.subr.mxu0 0.0
        %1136 = vmatpush1.msra.mxu0 0.0
        %1137 = vmatprep.subr.mxu0 0.0
        %1138 = vmatpush1.msra.mxu0 0.0
        %1139 = vmatprep.subr.mxu0 0.0
        %1140 = vmatpush1.msra.mxu0 0.0
        %1141 = vmatprep.subr.mxu0 0.0
        %1142 = vmatpush1.msra.mxu0 0.0
        %1143 = vmatprep.subr.mxu0 %v1112
        %1144 = vmatpush1.msra.mxu0 %v1111
        %1145 = vmatprep.subr.mxu0 0.0
        %1146 = vmatpush2.msra.mxu0 0.0
        %1147 = vmatprep.subr.mxu0 0.0
        %1148 = vmatpush2.msra.mxu0 0.0
        %1149 = vmatprep.subr.mxu0 0.0
        %1150 = vmatpush2.msra.mxu0 0.0
        %1151 = vmatprep.subr.mxu0 0.0
        %1152 = vmatpush2.msra.mxu0 0.0
        %1153 = vmatprep.subr.mxu0 0.0
        %1154 = vmatpush2.msra.mxu0 0.0
        %1155 = vmatprep.subr.mxu0 0.0
        %1156 = vmatpush2.msra.mxu0 0.0
        %1157 = vmatprep.subr.mxu0 0.0
        %1158 = vmatpush2.msra.mxu0 0.0
        %1159 = vmatprep.subr.mxu0 0.0
        %1160 = vmatpush2.msra.mxu0 0.0
        %1161 = vmatprep.subr.mxu0 0.0
        %1162 = vmatpush2.msra.mxu0 0.0
        %1163 = vmatprep.subr.mxu0 0.0
        %1164 = vmatpush2.msra.mxu0 0.0
        %1165 = vmatprep.subr.mxu0 0.0
        %1166 = vmatpush2.msra.mxu0 0.0
        %1167 = vmatprep.subr.mxu0 0.0
        %1168 = vmatpush2.msra.mxu0 0.0
        %1169 = vmatprep.subr.mxu0 0.0
        %1170 = vmatpush2.msra.mxu0 0.0
        %1171 = vmatprep.subr.mxu0 0.0
        %1172 = vmatpush2.msra.mxu0 0.0
        %1173 = vmatprep.subr.mxu0 0.0
        %1174 = vmatpush2.msra.mxu0 0.0
        %1175 = vmatprep.subr.mxu0 0.0
        %1176 = vmatpush2.msra.mxu0 0.0
        %1177 = vmatprep.mubr.f32.mxu0 0.0
        %1178 = vmatmul.mubr.f32.gmra.mxu0 %v577
        %v1179 = vpop.f32.mrf.mxu0
        %v1180 = vadd.f32 %v574, %v1179
        %v1181 = vpop.f32.mrf.mxu0
        %v1182 = vadd.f32 %v574, %v1181
        %1183 = vdwg.mxu0
        %vm1184 = vcmp.ge.s32.totalorder %v550, 5
        %vm1185 = vcmp.ge.s32.totalorder %v551, 5
        %v1186 = vsel %vm1184, %v1180, %v561
        %v1187 = vsel %vm1185, %v1182, %v561
        %v1190 = vcombine.low %v1186, %v1187
        %v1192 = vunpack.c.l.s4 1966171168
        %v1193 = vunpack.c.0.s8 %v1192
        %v1194 = vlaneseq
        %v1195 = vshrl.u32 %v1194, 7
        %v1196 = vsub.s32 %v1193, %v1195
        %v1197 = vrot.slane %v1190, %v1196
        %v1199 = vunpack.c.l.s4 1966171168
        %v1200 = vunpack.c.0.s8 %v1199
        %v1201 = vlaneseq
        %v1202 = vshrl.u32 %v1201, 7
        %v1203 = vsub.s32 %v1200, %v1202
        %v1204 = vrot.slane %v1197, %v1203
        %s1206 = scalar_lea.vmem %s342, 5 [#allocation7]
        %1207 = vst.msk [vmem:[%s1206] ss:$8 sm:$0x3] %vm671, %v1204
        %1208 = vst.msk [vmem:[%s1206] ss:$8 sm:$0x0] %vm671, %v1204
        %1209 = vrot.lane.b32.xlu0 %v439, 6
        %v1210 = vpop.permute.xlu0 %1209
        %1211 = vrot.lane.b32.xlu0 %v441, 6
        %v1212 = vpop.permute.xlu0 %1211
        %vm1213 = vcmp.lt.s32.totalorder %v526, 6
        %v1214 = vsel %vm1213, %v1210, %v1212
        %v1215 = vsel %vm1213, %v1212, %v1210
        %v1216 = vsub.f32 %v521, %v1215
        %v1217 = vsub.f32 %v523, %v1214
        %v1218 = vmax.f32 %v1216, 0.0
        %v1219 = vmax.f32 %v1217, 0.0
        %1220 = vmatprep.subr.mxu0 0.0
        %1221 = vmatpush1.msra.mxu0 0.0
        %1222 = vmatprep.subr.mxu0 0.0
        %1223 = vmatpush1.msra.mxu0 0.0
        %1224 = vmatprep.subr.mxu0 0.0
        %1225 = vmatpush1.msra.mxu0 0.0
        %1226 = vmatprep.subr.mxu0 0.0
        %1227 = vmatpush1.msra.mxu0 0.0
        %1228 = vmatprep.subr.mxu0 0.0
        %1229 = vmatpush1.msra.mxu0 0.0
        %1230 = vmatprep.subr.mxu0 0.0
        %1231 = vmatpush1.msra.mxu0 0.0
        %1232 = vmatprep.subr.mxu0 0.0
        %1233 = vmatpush1.msra.mxu0 0.0
        %1234 = vmatprep.subr.mxu0 0.0
        %1235 = vmatpush1.msra.mxu0 0.0
        %1236 = vmatprep.subr.mxu0 0.0
        %1237 = vmatpush1.msra.mxu0 0.0
        %1238 = vmatprep.subr.mxu0 0.0
        %1239 = vmatpush1.msra.mxu0 0.0
        %1240 = vmatprep.subr.mxu0 0.0
        %1241 = vmatpush1.msra.mxu0 0.0
        %1242 = vmatprep.subr.mxu0 0.0
        %1243 = vmatpush1.msra.mxu0 0.0
        %1244 = vmatprep.subr.mxu0 0.0
        %1245 = vmatpush1.msra.mxu0 0.0
        %1246 = vmatprep.subr.mxu0 0.0
        %1247 = vmatpush1.msra.mxu0 0.0
        %1248 = vmatprep.subr.mxu0 0.0
        %1249 = vmatpush1.msra.mxu0 0.0
        %1250 = vmatprep.subr.mxu0 %v1219
        %1251 = vmatpush1.msra.mxu0 %v1218
        %1252 = vmatprep.subr.mxu0 0.0
        %1253 = vmatpush2.msra.mxu0 0.0
        %1254 = vmatprep.subr.mxu0 0.0
        %1255 = vmatpush2.msra.mxu0 0.0
        %1256 = vmatprep.subr.mxu0 0.0
        %1257 = vmatpush2.msra.mxu0 0.0
        %1258 = vmatprep.subr.mxu0 0.0
        %1259 = vmatpush2.msra.mxu0 0.0
        %1260 = vmatprep.subr.mxu0 0.0
        %1261 = vmatpush2.msra.mxu0 0.0
        %1262 = vmatprep.subr.mxu0 0.0
        %1263 = vmatpush2.msra.mxu0 0.0
        %1264 = vmatprep.subr.mxu0 0.0
        %1265 = vmatpush2.msra.mxu0 0.0
        %1266 = vmatprep.subr.mxu0 0.0
        %1267 = vmatpush2.msra.mxu0 0.0
        %1268 = vmatprep.subr.mxu0 0.0
        %1269 = vmatpush2.msra.mxu0 0.0
        %1270 = vmatprep.subr.mxu0 0.0
        %1271 = vmatpush2.msra.mxu0 0.0
        %1272 = vmatprep.subr.mxu0 0.0
        %1273 = vmatpush2.msra.mxu0 0.0
        %1274 = vmatprep.subr.mxu0 0.0
        %1275 = vmatpush2.msra.mxu0 0.0
        %1276 = vmatprep.subr.mxu0 0.0
        %1277 = vmatpush2.msra.mxu0 0.0
        %1278 = vmatprep.subr.mxu0 0.0
        %1279 = vmatpush2.msra.mxu0 0.0
        %1280 = vmatprep.subr.mxu0 0.0
        %1281 = vmatpush2.msra.mxu0 0.0
        %1282 = vmatprep.subr.mxu0 0.0
        %1283 = vmatpush2.msra.mxu0 0.0
        %1284 = vmatprep.mubr.f32.mxu0 0.0
        %1285 = vmatmul.mubr.f32.gmra.mxu0 %v577
        %v1286 = vpop.f32.mrf.mxu0
        %v1287 = vadd.f32 %v574, %v1286
        %v1288 = vpop.f32.mrf.mxu0
        %v1289 = vadd.f32 %v574, %v1288
        %1290 = vdwg.mxu0
        %vm1291 = vcmp.ge.s32.totalorder %v550, 6
        %vm1292 = vcmp.ge.s32.totalorder %v551, 6
        %v1293 = vsel %vm1291, %v1287, %v561
        %v1294 = vsel %vm1292, %v1289, %v561
        %v1297 = vcombine.low %v1293, %v1294
        %v1299 = vunpack.c.l.s4 1966171168
        %v1300 = vunpack.c.0.s8 %v1299
        %v1301 = vlaneseq
        %v1302 = vshrl.u32 %v1301, 7
        %v1303 = vsub.s32 %v1300, %v1302
        %v1304 = vrot.slane %v1297, %v1303
        %v1306 = vunpack.c.l.s4 1966171168
        %v1307 = vunpack.c.0.s8 %v1306
        %v1308 = vlaneseq
        %v1309 = vshrl.u32 %v1308, 7
        %v1310 = vsub.s32 %v1307, %v1309
        %v1311 = vrot.slane %v1304, %v1310
        %s1313 = scalar_lea.vmem %s342, 6 [#allocation7]
        %1314 = vst.msk [vmem:[%s1313] ss:$8 sm:$0x3] %vm671, %v1311
        %1315 = vst.msk [vmem:[%s1313] ss:$8 sm:$0x0] %vm671, %v1311
        %1316 = vrot.lane.b32.xlu0 %v439, 7
        %v1317 = vpop.permute.xlu0 %1316
        %1318 = vrot.lane.b32.xlu0 %v441, 7
        %v1319 = vpop.permute.xlu0 %1318
        %vm1320 = vcmp.lt.s32.totalorder %v526, 7
        %v1321 = vsel %vm1320, %v1317, %v1319
        %v1322 = vsel %vm1320, %v1319, %v1317
        %v1323 = vsub.f32 %v521, %v1322
        %v1324 = vsub.f32 %v523, %v1321
        %v1325 = vmax.f32 %v1323, 0.0
        %v1326 = vmax.f32 %v1324, 0.0
        %1327 = vmatprep.subr.mxu0 0.0
        %1328 = vmatpush1.msra.mxu0 0.0
        %1329 = vmatprep.subr.mxu0 0.0
        %1330 = vmatpush1.msra.mxu0 0.0
        %1331 = vmatprep.subr.mxu0 0.0
        %1332 = vmatpush1.msra.mxu0 0.0
        %1333 = vmatprep.subr.mxu0 0.0
        %1334 = vmatpush1.msra.mxu0 0.0
        %1335 = vmatprep.subr.mxu0 0.0
        %1336 = vmatpush1.msra.mxu0 0.0
        %1337 = vmatprep.subr.mxu0 0.0
        %1338 = vmatpush1.msra.mxu0 0.0
        %1339 = vmatprep.subr.mxu0 0.0
        %1340 = vmatpush1.msra.mxu0 0.0
        %1341 = vmatprep.subr.mxu0 0.0
        %1342 = vmatpush1.msra.mxu0 0.0
        %1343 = vmatprep.subr.mxu0 0.0
        %1344 = vmatpush1.msra.mxu0 0.0
        %1345 = vmatprep.subr.mxu0 0.0
        %1346 = vmatpush1.msra.mxu0 0.0
        %1347 = vmatprep.subr.mxu0 0.0
        %1348 = vmatpush1.msra.mxu0 0.0
        %1349 = vmatprep.subr.mxu0 0.0
        %1350 = vmatpush1.msra.mxu0 0.0
        %1351 = vmatprep.subr.mxu0 0.0
        %1352 = vmatpush1.msra.mxu0 0.0
        %1353 = vmatprep.subr.mxu0 0.0
        %1354 = vmatpush1.msra.mxu0 0.0
        %1355 = vmatprep.subr.mxu0 0.0
        %1356 = vmatpush1.msra.mxu0 0.0
        %1357 = vmatprep.subr.mxu0 %v1326
        %1358 = vmatpush1.msra.mxu0 %v1325
        %1359 = vmatprep.subr.mxu0 0.0
        %1360 = vmatpush2.msra.mxu0 0.0
        %1361 = vmatprep.subr.mxu0 0.0
        %1362 = vmatpush2.msra.mxu0 0.0
        %1363 = vmatprep.subr.mxu0 0.0
        %1364 = vmatpush2.msra.mxu0 0.0
        %1365 = vmatprep.subr.mxu0 0.0
        %1366 = vmatpush2.msra.mxu0 0.0
        %1367 = vmatprep.subr.mxu0 0.0
        %1368 = vmatpush2.msra.mxu0 0.0
        %1369 = vmatprep.subr.mxu0 0.0
        %1370 = vmatpush2.msra.mxu0 0.0
        %1371 = vmatprep.subr.mxu0 0.0
        %1372 = vmatpush2.msra.mxu0 0.0
        %1373 = vmatprep.subr.mxu0 0.0
        %1374 = vmatpush2.msra.mxu0 0.0
        %1375 = vmatprep.subr.mxu0 0.0
        %1376 = vmatpush2.msra.mxu0 0.0
        %1377 = vmatprep.subr.mxu0 0.0
        %1378 = vmatpush2.msra.mxu0 0.0
        %1379 = vmatprep.subr.mxu0 0.0
        %1380 = vmatpush2.msra.mxu0 0.0
        %1381 = vmatprep.subr.mxu0 0.0
        %1382 = vmatpush2.msra.mxu0 0.0
        %1383 = vmatprep.subr.mxu0 0.0
        %1384 = vmatpush2.msra.mxu0 0.0
        %1385 = vmatprep.subr.mxu0 0.0
        %1386 = vmatpush2.msra.mxu0 0.0
        %1387 = vmatprep.subr.mxu0 0.0
        %1388 = vmatpush2.msra.mxu0 0.0
        %1389 = vmatprep.subr.mxu0 0.0
        %1390 = vmatpush2.msra.mxu0 0.0
        %1391 = vmatprep.mubr.f32.mxu0 0.0
        %1392 = vmatmul.mubr.f32.gmra.mxu0 %v577
        %v1393 = vpop.f32.mrf.mxu0
        %v1394 = vadd.f32 %v574, %v1393
        %v1395 = vpop.f32.mrf.mxu0
        %v1396 = vadd.f32 %v574, %v1395
        %1397 = vdwg.mxu0
        %vm1398 = vcmp.ge.s32.totalorder %v550, 7
        %vm1399 = vcmp.ge.s32.totalorder %v551, 7
        %v1400 = vsel %vm1398, %v1394, %v561
        %v1401 = vsel %vm1399, %v1396, %v561
        %v1404 = vcombine.low %v1400, %v1401
        %v1406 = vunpack.c.l.s4 1966171168
        %v1407 = vunpack.c.0.s8 %v1406
        %v1408 = vlaneseq
        %v1409 = vshrl.u32 %v1408, 7
        %v1410 = vsub.s32 %v1407, %v1409
        %v1411 = vrot.slane %v1404, %v1410
        %v1413 = vunpack.c.l.s4 1966171168
        %v1414 = vunpack.c.0.s8 %v1413
        %v1415 = vlaneseq
        %v1416 = vshrl.u32 %v1415, 7
        %v1417 = vsub.s32 %v1414, %v1416
        %v1418 = vrot.slane %v1411, %v1417
        %s1420 = scalar_lea.vmem %s342, 7 [#allocation7]
        %1421 = vst.msk [vmem:[%s1420] ss:$8 sm:$0x3] %vm671, %v1418
        %1422 = vst.msk [vmem:[%s1420] ss:$8 sm:$0x0] %vm671, %v1418
        %s1423 = sand.u32 %s211, 1
        %s1424 = scalar_lea.sflag [#allocation6], %s1423
        %s1425 = sand.u32 %s211, 1
        %s1426 = smul.addr %s1425, 16
        %s1427 = scalar_lea.vmem [#allocation7], %s1426
        // Predicated region
        $region53: #{tpu_custom_call.1} parent=47 // pred_check
          %p1428 = pneg %p221
        $region54: #{tpu_custom_call.1} parent=47 // pred_check_branch
          %1430 = sbr.rel (%p1428) target = $region56
        $region55: #{tpu_custom_call.1} parent=47 // pred_region
          %s1431 = smul.u32 2, %s33
          %s1433 = ssub.s32 256, 256
          %1434 = vsyncadd %s1424, %s1433
          %s1435 = smul.addr %s32, 2
          %s1436 = sadd.s32 %s1431, %s1435
          %s1437 = smul.addr %s1436, 128
          %s1438 = scalar_lea.hbm %s7, %s1437
          %s1440 = sshll.u32 %s1427, 4
          %s1441 = int_to_ptr.vmem [resolvable:$true] %s1440
          %1443 = dma.vmem_to_hbm [thread:$0]  %s1441, 256, %s1438, %s1424
        $region56: #{tpu_custom_call.1} parent=47 // pred_fallthru
          _
      $region48: #{tpu_custom_call.1} parent=5 // pred_fallthru
        _
      %p1444 = scmp.le.s32.totalorder 2, %s23
      // Predicated region
      $region57: #{tpu_custom_call.1} parent=5 // pred_check
        %p1445 = pneg %p1444
      $region58: #{tpu_custom_call.1} parent=5 // pred_check_branch
        %1447 = sbr.rel (%p1445) target = $region60
      $region59: #{tpu_custom_call.1} parent=5 // pred_region
        %s1448 = ssub.s32 %s23, 2
        // Predicated region
        $region61: #{tpu_custom_call.1} parent=59 // pred_check
          %p1449 = pneg %p227
        $region62: #{tpu_custom_call.1} parent=59 // pred_check_branch
          %1451 = sbr.rel (%p1449) target = $region64
        $region63: #{tpu_custom_call.1} parent=59 // pred_region
          %s1452 = sand.u32 %s212, 1
          %s1453 = scalar_lea.sflag [#allocation6], %s1452
          %s1454 = sand.u32 %s212, 1
          %s1455 = smul.addr %s1454, 16
          %s1456 = scalar_lea.vmem [#allocation7], %s1455
          %1457 = dma.done %s1453, 256
        $region64: #{tpu_custom_call.1} parent=59 // pred_fallthru
          _
      $region60: #{tpu_custom_call.1} parent=5 // pred_fallthru
        _
    $region6: #{tpu_custom_call.1} parent=1 // loop_footer
      %s27 = sadd.s32 1, %s23
    $region7: #{tpu_custom_call.1} parent=1 // loop_footer_branch
      %22 = sbr.rel target = $region3
    $region8: #{tpu_custom_call.1} parent=1 // loop_exit
      _
    %1458 = vsyncpa [#allocation5], 1
    %s1459 = scalar_lea.sflag [#allocation5], 1
    %1460 = vsyncpa %s1459, 1
    %1461 = vsyncpa [#allocation6], 1
    %s1462 = scalar_lea.sflag [#allocation6], 1
    %1463 = vsyncpa %s1462, 1

</llo_original>
